<compile_context>
chip_gen: v6e
topology: v6e:2x2x1
jax: 0.10.0
libtpu: 0.0.40
codegen_flags: <defaults>
</compile_context>

<pallas_src>
import math
import functools

import jax
import jax.numpy as jnp
from jax.experimental import pallas as pl
from jax.experimental.pallas import tpu as pltpu


def _layernorm_f32(x, gamma, beta, eps=1e-5):
    mean = jnp.mean(x, axis=-1, keepdims=True)
    var = jnp.mean((x - mean) ** 2, axis=-1, keepdims=True)
    return (x - mean) * jax.lax.rsqrt(var + eps) * gamma + beta


# --------------------------- kernel 1: attention ------------------------------
def attn_kernel(x_ref, mask_ref, ln1g_ref, ln1b_ref,
                wqkv_ref, bqkv_ref, wproj_ref, bproj_ref,
                out_ref,
                xn_ref, acc_ref,
                *, heads_per_group, head_dim):
    g = pl.program_id(1)
    n_groups = pl.num_programs(1)

    # ---- once per batch element: LN1 into bf16 scratch, zero accumulator ----
    @pl.when(g == 0)
    def _():
        x = x_ref[0]                                              # (T, C) f32
        xn = _layernorm_f32(x, ln1g_ref[...], ln1b_ref[...])
        xn_ref[...] = xn.astype(xn_ref.dtype)                     # bf16
        acc_ref[...] = jnp.zeros_like(acc_ref)

    xn = xn_ref[...]                                              # (T, C) bf16
    hd = head_dim
    scale = 1.0 / math.sqrt(hd)

    # one fused QKV projection for the whole head group: N = 3*G*hd
    qkv = jnp.dot(xn, wqkv_ref[0],
                  preferred_element_type=jnp.float32) + bqkv_ref[0]

    mask = mask_ref[...]                                          # (T, T) f32

    # per-head attention inside the group (static unroll; slices are static)
    ctxs = []
    for i in range(heads_per_group):
        off = i * 3 * hd
        k = qkv[:, off:off + hd]
        q = qkv[:, off + hd:off + 2 * hd]
        v = qkv[:, off + 2 * hd:off + 3 * hd]

        # q @ k^T without an explicit transpose (contract hd axes on the MXU)
        s = jax.lax.dot_general(
            q.astype(jnp.bfloat16), k.astype(jnp.bfloat16),
            dimension_numbers=(((1,), (1,)), ((), ())),
            preferred_element_type=jnp.float32) * scale
        s = s + mask
        s = s - jnp.max(s, axis=-1, keepdims=True)
        e = jnp.exp(s)
        p = e * pl.reciprocal(jnp.sum(e, axis=-1, keepdims=True), approx=True)

        ctxs.append(jnp.dot(p.astype(jnp.bfloat16), v.astype(jnp.bfloat16),
                            preferred_element_type=jnp.float32))  # (T, hd) f32

    ctx_group = ctxs[0] if heads_per_group == 1 else jnp.concatenate(ctxs, axis=-1)

    # one group-level projection: K = G*hd, single f32 RMW per group
    acc_ref[...] += jnp.dot(ctx_group.astype(jnp.bfloat16), wproj_ref[0],
                            preferred_element_type=jnp.float32)   # (T, C)

    # ---- once at the last group: residual 1 ----
    @pl.when(g == n_groups - 1)
    def _():
        out_ref[0] = (x_ref[0] + acc_ref[...] + bproj_ref[...]).astype(out_ref.dtype)


# --------------------------- kernel 2: feed-forward ---------------------------
def ffn_kernel(x1_ref, ln2g_ref, ln2b_ref,
               wfc1_ref, bfc1_ref, wfc2_ref, bfc2_ref,
               out_ref,
               x2n_ref, acc_ref):
    j = pl.program_id(1)
    n_tiles = pl.num_programs(1)

    @pl.when(j == 0)
    def _():
        x1 = x1_ref[0]                                            # (T, C) f32
        x2n = _layernorm_f32(x1, ln2g_ref[...], ln2b_ref[...])
        x2n_ref[...] = x2n.astype(x2n_ref.dtype)                  # bf16
        acc_ref[...] = jnp.zeros_like(acc_ref)

    # hidden-dim tile: relu(x2n @ W1[:, tile] + b1[tile]) @ W2[tile, :]
    h = jnp.dot(x2n_ref[...], wfc1_ref[...],
                preferred_element_type=jnp.float32) + bfc1_ref[...]
    h = jnp.maximum(h, 0.0)                                       # ReLU (f32)
    acc_ref[...] += jnp.dot(h.astype(jnp.bfloat16), wfc2_ref[...],
                            preferred_element_type=jnp.float32)

    @pl.when(j == n_tiles - 1)
    def _():
        out_ref[0] = (x1_ref[0] + acc_ref[...] + bfc2_ref[...]).astype(out_ref.dtype)


# ------------------------------- host wrapper ---------------------------------
def _compiler_params():
    kwargs = dict(dimension_semantics=("parallel", "arbitrary"))
    try:
        cap = pltpu.get_tpu_info().vmem_capacity_bytes
        # leave headroom for double buffers / compiler scratch (esp. v7x 64 MiB)
        kwargs["vmem_limit_bytes"] = int(cap * 3 // 4)
    except Exception:
        pass
    return pltpu.CompilerParams(**kwargs)


def transformer_block(x, params, n_heads):
    B, T, C = x.shape
    H = n_heads
    assert C % H == 0
    hd = C // H
    f32, bf16 = jnp.float32, jnp.bfloat16

    # ---- head grouping: aim for G*hd >= 256 so per-group matmuls fill the MXU
    G = max(1, min(H, max(1, 256 // hd)))
    while H % G:
        G -= 1
    n_groups = H // G

    # ---- host-side re-layout of fused QKV / projection weights, group-major --
    w_qkv = params["w_qkv"]              # (C, 3C), column order: k | q | v
    b_qkv = params["b_qkv"]              # (1, 3C)

    def pack_w(w):                       # (C, 3C) -> (n_groups, C, 3*G*hd)
        wk = w[:, 0 * C:1 * C].reshape(C, H, hd)
        wq = w[:, 1 * C:2 * C].reshape(C, H, hd)
        wv = w[:, 2 * C:3 * C].reshape(C, H, hd)
        per_head = jnp.stack([wk, wq, wv], axis=2)                # (C, H, 3, hd)
        per_head = jnp.transpose(per_head, (1, 0, 2, 3)).reshape(H, C, 3 * hd)
        grouped = per_head.reshape(n_groups, G, C, 3 * hd)
        return jnp.transpose(grouped, (0, 2, 1, 3)).reshape(n_groups, C, 3 * G * hd)

    def pack_b(b):                       # (1, 3C) -> (n_groups, 1, 3*G*hd)
        bk = b[:, 0 * C:1 * C].reshape(1, H, hd)
        bq = b[:, 1 * C:2 * C].reshape(1, H, hd)
        bv = b[:, 2 * C:3 * C].reshape(1, H, hd)
        per_head = jnp.stack([bk, bq, bv], axis=2)                # (1, H, 3, hd)
        per_head = jnp.transpose(per_head, (1, 0, 2, 3)).reshape(H, 1, 3 * hd)
        grouped = per_head.reshape(n_groups, G, 1, 3 * hd)
        return jnp.transpose(grouped, (0, 2, 1, 3)).reshape(n_groups, 1, 3 * G * hd)

    wqkv_p = pack_w(w_qkv).astype(bf16)
    bqkv_p = pack_b(b_qkv).astype(f32)
    wproj_p = params["w_proj"].reshape(n_groups, G * hd, C).astype(bf16)
    bproj = params["b_proj"].astype(f32)
    ln1g = params["ln1_g"].astype(f32)
    ln1b = params["ln1_b"].astype(f32)
    ln2g = params["ln2_g"].astype(f32)
    ln2b = params["ln2_b"].astype(f32)
    wfc1 = params["w_fc1"].astype(bf16)
    bfc1 = params["b_fc1"].astype(f32)
    wfc2 = params["w_fc2"].astype(bf16)
    bfc2 = params["b_fc2"].astype(f32)

    # additive causal bias, hoisted out of the kernel (built once on the host)
    idx = jnp.arange(T)
    mask = jnp.where(idx[:, None] >= idx[None, :], 0.0, -1e30).astype(f32)

    def const_spec(arr):                 # same block every step -> VMEM-resident
        nd = arr.ndim
        return pl.BlockSpec(arr.shape, lambda b, i: (0,) * nd)

    cparams = _compiler_params()

    # --------------------- kernel 1: x1 = x + MHA(LN1(x)) ---------------------
    # TODO(synk): for configs with n_groups > 1 and large B, hoist the group
    # weights to a resident (n_groups, ...) const block to avoid re-streaming
    # them once per batch element.
    x1 = pl.pallas_call(
        functools.partial(attn_kernel, heads_per_group=G, head_dim=hd),
        out_shape=jax.ShapeDtypeStruct((B, T, C), jnp.float32),
        grid_spec=pltpu.PrefetchScalarGridSpec(
            num_scalar_prefetch=0,
            grid=(B, n_groups),
            in_specs=[
                pl.BlockSpec((1, T, C), lambda b, g: (b, 0, 0)),           # x
                const_spec(mask),                                          # causal bias
                const_spec(ln1g), const_spec(ln1b),                        # LN1
                pl.BlockSpec((1, C, 3 * G * hd), lambda b, g: (g, 0, 0)),  # W_qkv group
                pl.BlockSpec((1, 1, 3 * G * hd), lambda b, g: (g, 0, 0)),  # b_qkv group
                pl.BlockSpec((1, G * hd, C), lambda b, g: (g, 0, 0)),      # W_proj group
                const_spec(bproj),                                         # b_proj
            ],
            out_specs=pl.BlockSpec((1, T, C), lambda b, g: (b, 0, 0)),
            scratch_shapes=[pltpu.VMEM((T, C), bf16),     # LN1(x)
                            pltpu.VMEM((T, C), f32)],     # attention accumulator
        ),
        compiler_params=cparams,
    )(x, mask, ln1g, ln1b, wqkv_p, bqkv_p, wproj_p, bproj)

    # ------------------ kernel 2: out = x1 + FFN(LN2(x1)) ---------------------
    Dh = 4 * C
    tile_h = 512 if (Dh > 512 and Dh % 512 == 0) else Dh
    n_tiles = Dh // tile_h

    out = pl.pallas_call(
        ffn_kernel,
        out_shape=jax.ShapeDtypeStruct((B, T, C), jnp.float32),
        grid_spec=pltpu.PrefetchScalarGridSpec(
            num_scalar_prefetch=0,
            grid=(B, n_tiles),
            in_specs=[
                pl.BlockSpec((1, T, C), lambda b, j: (b, 0, 0)),   # x1
                const_spec(ln2g), const_spec(ln2b),                # LN2
                pl.BlockSpec((C, tile_h), lambda b, j: (0, j)),    # W_fc1 tile
                pl.BlockSpec((1, tile_h), lambda b, j: (0, j)),    # b_fc1 tile
                pl.BlockSpec((tile_h, C), lambda b, j: (j, 0)),    # W_fc2 tile
                const_spec(bfc2),                                  # b_fc2
            ],
            out_specs=pl.BlockSpec((1, T, C), lambda b, j: (b, 0, 0)),
            scratch_shapes=[pltpu.VMEM((T, C), bf16),     # LN2(x1)
                            pltpu.VMEM((T, C), f32)],     # FFN accumulator
        ),
        compiler_params=cparams,
    )(x1, ln2g, ln2b, wfc1, bfc1, wfc2, bfc2)

    return out


# ------------------------------ reference & init ------------------------------
def block_reference(x, params, n_heads):
    B, T, C = x.shape
    H = n_heads
    hd = C // H

    def ln(v, g, b, eps=1e-5):
        m = v.mean(-1, keepdims=True)
        var = ((v - m) ** 2).mean(-1, keepdims=True)
        return (v - m) * jax.lax.rsqrt(var + eps) * g + b

    xn = ln(x, params["ln1_g"], params["ln1_b"])
    qkv = xn @ params["w_qkv"] + params["b_qkv"]
    k, q, v = qkv[..., :C], qkv[..., C:2 * C], qkv[..., 2 * C:]

    def split_heads(t):
        return t.reshape(B, T, H, hd).transpose(0, 2, 1, 3)

    k, q, v = split_heads(k), split_heads(q), split_heads(v)
    s = (q @ jnp.swapaxes(k, -1, -2)) * (1.0 / math.sqrt(hd))
    causal = jnp.tril(jnp.ones((T, T))) == 0
    s = jnp.where(causal, -jnp.inf, s)
    p = jax.nn.softmax(s, axis=-1)
    ctx = (p @ v).transpose(0, 2, 1, 3).reshape(B, T, C)
    x1 = x + ctx @ params["w_proj"] + params["b_proj"]

    x2n = ln(x1, params["ln2_g"], params["ln2_b"])
    hdd = jnp.maximum(x2n @ params["w_fc1"] + params["b_fc1"], 0.0)
    return x1 + hdd @ params["w_fc2"] + params["b_fc2"]


def init_params(key, n_embeds):
    C = n_embeds
    ks = jax.random.split(key, 8)
    scale = 0.02
    # Linear weights stored as (in_features, out_features); biases as (1, out).
    return {
        "ln1_g": jnp.ones((1, C), jnp.float32),
        "ln1_b": jnp.zeros((1, C), jnp.float32),
        "w_qkv": scale * jax.random.normal(ks[0], (C, 3 * C), jnp.float32),
        "b_qkv": scale * jax.random.normal(ks[1], (1, 3 * C), jnp.float32),
        "w_proj": scale * jax.random.normal(ks[2], (C, C), jnp.float32),
        "b_proj": scale * jax.random.normal(ks[3], (1, C), jnp.float32),
        "ln2_g": jnp.ones((1, C), jnp.float32),
        "ln2_b": jnp.zeros((1, C), jnp.float32),
        "w_fc1": scale * jax.random.normal(ks[4], (C, 4 * C), jnp.float32),
        "b_fc1": scale * jax.random.normal(ks[5], (1, 4 * C), jnp.float32),
        "w_fc2": scale * jax.random.normal(ks[6], (4 * C, C), jnp.float32),
        "b_fc2": scale * jax.random.normal(ks[7], (1, C), jnp.float32),
    }


if __name__ == "__main__":
    B, T, C, H = 2, 8, 32, 4          # batch, seq (== block_size), n_embeds, n_heads
    key = jax.random.PRNGKey(0)
    kx, kp = jax.random.split(key)
    x = jax.random.normal(kx, (B, T, C), jnp.float32)
    params = init_params(kp, C)

    out = transformer_block(x, params, n_heads=H)
    jax.block_until_ready(out)
    assert out.shape == (B, T, C)

    ref = block_reference(x, params, n_heads=H)
    max_err = float(jnp.max(jnp.abs(out - ref)))
    assert jnp.allclose(out, ref, atol=5e-2, rtol=5e-2), f"max_err={max_err}"

    print("KERNEL_OK")
</pallas_src>

<mosaic_0001>
module attributes {stable_mosaic.version = 11 : i64} {
  func.func @attn_kernel(%arg0: i32, %arg1: i32, %arg2: memref<1x8x32xf32, #tpu.memory_space<vmem>>, %arg3: memref<8x8xf32, #tpu.memory_space<vmem>>, %arg4: memref<1x32xf32, #tpu.memory_space<vmem>>, %arg5: memref<1x32xf32, #tpu.memory_space<vmem>>, %arg6: memref<1x32x96xbf16, #tpu.memory_space<vmem>>, %arg7: memref<1x1x96xf32, #tpu.memory_space<vmem>>, %arg8: memref<1x32x32xbf16, #tpu.memory_space<vmem>>, %arg9: memref<1x32xf32, #tpu.memory_space<vmem>>, %arg10: memref<1x8x32xf32, #tpu.memory_space<vmem>>, %arg11: memref<8x32xbf16, #tpu.memory_space<vmem>>, %arg12: memref<8x32xf32, #tpu.memory_space<vmem>>) attributes {dimension_semantics = [#tpu.dimension_semantics<parallel>, #tpu.dimension_semantics<arbitrary>], iteration_bounds = array<i64: 2, 1>, scalar_prefetch = 0 : i64, scratch_operands = 2 : i64, tpu.core_type = #tpu.core_type<tc>, window_params = [{transform_indices = @transform_0, window_bounds = array<i64: 1, 8, 32>}, {pipeline_mode = #tpu.pipeline_mode<synchronous>, transform_indices = @transform_1, window_bounds = array<i64: 8, 8>}, {pipeline_mode = #tpu.pipeline_mode<synchronous>, transform_indices = @transform_2, window_bounds = array<i64: 1, 32>}, {pipeline_mode = #tpu.pipeline_mode<synchronous>, transform_indices = @transform_3, window_bounds = array<i64: 1, 32>}, {transform_indices = @transform_4, window_bounds = array<i64: 1, 32, 96>}, {transform_indices = @transform_5, window_bounds = array<i64: 1, 1, 96>}, {transform_indices = @transform_6, window_bounds = array<i64: 1, 32, 32>}, {pipeline_mode = #tpu.pipeline_mode<synchronous>, transform_indices = @transform_7, window_bounds = array<i64: 1, 32>}, {transform_indices = @transform_8, window_bounds = array<i64: 1, 8, 32>}]} {
    %c0_i32 = arith.constant 0 : i32
    %0 = arith.cmpi eq, %arg1, %c0_i32 : i32
    %1 = arith.extui %0 : i1 to i32
    %c0_i32_0 = arith.constant 0 : i32
    %2 = arith.cmpi ne, %1, %c0_i32_0 : i32
    scf.if %2 {
      %c0_40 = arith.constant 0 : index
      %c0_41 = arith.constant 0 : index
      %c0_42 = arith.constant 0 : index
      %111 = vector.load %arg2[%c0_40, %c0_41, %c0_42] : memref<1x8x32xf32, #tpu.memory_space<vmem>>, vector<1x8x32xf32>
      %112 = vector.shape_cast %111 : vector<1x8x32xf32> to vector<8x32xf32>
      %c0_43 = arith.constant 0 : index
      %c0_44 = arith.constant 0 : index
      %113 = vector.load %arg4[%c0_43, %c0_44] : memref<1x32xf32, #tpu.memory_space<vmem>>, vector<1x32xf32>
      %c0_45 = arith.constant 0 : index
      %c0_46 = arith.constant 0 : index
      %114 = vector.load %arg5[%c0_45, %c0_46] : memref<1x32xf32, #tpu.memory_space<vmem>>, vector<1x32xf32>
      %cst_47 = arith.constant dense<0.000000e+00> : vector<8xf32>
      %115 = vector.multi_reduction <add>, %112, %cst_47 [1] : vector<8x32xf32> to vector<8xf32>
      %116 = vector.shape_cast %115 : vector<8xf32> to vector<8x1xf32>
      %cst_48 = arith.constant 3.200000e+01 : f32
      %117 = vector.broadcast %cst_48 : f32 to vector<8x1xf32>
      %118 = arith.divf %116, %117 : vector<8x1xf32>
      %119 = vector.broadcast %118 : vector<8x1xf32> to vector<8x32xf32>
      %120 = arith.subf %112, %119 : vector<8x32xf32>
      %121 = arith.mulf %120, %120 : vector<8x32xf32>
      %cst_49 = arith.constant dense<0.000000e+00> : vector<8xf32>
      %122 = vector.multi_reduction <add>, %121, %cst_49 [1] : vector<8x32xf32> to vector<8xf32>
      %123 = vector.shape_cast %122 : vector<8xf32> to vector<8x1xf32>
      %cst_50 = arith.constant 3.200000e+01 : f32
      %124 = vector.broadcast %cst_50 : f32 to vector<8x1xf32>
      %125 = arith.divf %123, %124 : vector<8x1xf32>
      %126 = vector.broadcast %118 : vector<8x1xf32> to vector<8x32xf32>
      %127 = arith.subf %112, %126 : vector<8x32xf32>
      %cst_51 = arith.constant 9.99999974E-6 : f32
      %128 = vector.broadcast %cst_51 : f32 to vector<8x1xf32>
      %129 = arith.addf %125, %128 : vector<8x1xf32>
      %130 = math.rsqrt %129 : vector<8x1xf32>
      %131 = vector.broadcast %130 : vector<8x1xf32> to vector<8x32xf32>
      %132 = arith.mulf %127, %131 : vector<8x32xf32>
      %133 = vector.broadcast %113 : vector<1x32xf32> to vector<8x32xf32>
      %134 = arith.mulf %132, %133 : vector<8x32xf32>
      %135 = vector.broadcast %114 : vector<1x32xf32> to vector<8x32xf32>
      %136 = arith.addf %134, %135 : vector<8x32xf32>
      %137 = arith.truncf %136 : vector<8x32xf32> to vector<8x32xbf16>
      %c0_52 = arith.constant 0 : index
      %c0_53 = arith.constant 0 : index
      %138 = vector.load %arg11[%c0_52, %c0_53] : memref<8x32xbf16, #tpu.memory_space<vmem>>, vector<8x32xbf16>
      tpu.vector_store %arg11[%c0_52, %c0_53], %137 {strides = array<i32>} : memref<8x32xbf16, #tpu.memory_space<vmem>>, vector<8x32xbf16>,
      %cst_54 = arith.constant 0.000000e+00 : f32
      %139 = vector.broadcast %cst_54 : f32 to vector<8x32xf32>
      %c0_55 = arith.constant 0 : index
      %c0_56 = arith.constant 0 : index
      %140 = vector.load %arg12[%c0_55, %c0_56] : memref<8x32xf32, #tpu.memory_space<vmem>>, vector<8x32xf32>
      tpu.vector_store %arg12[%c0_55, %c0_56], %139 {strides = array<i32>} : memref<8x32xf32, #tpu.memory_space<vmem>>, vector<8x32xf32>,
    } else {
    }
    %c0 = arith.constant 0 : index
    %c0_1 = arith.constant 0 : index
    %3 = vector.load %arg11[%c0, %c0_1] : memref<8x32xbf16, #tpu.memory_space<vmem>>, vector<8x32xbf16>
    %c0_2 = arith.constant 0 : index
    %c0_3 = arith.constant 0 : index
    %c0_4 = arith.constant 0 : index
    %4 = vector.load %arg6[%c0_2, %c0_3, %c0_4] : memref<1x32x96xbf16, #tpu.memory_space<vmem>>, vector<1x32x96xbf16>
    %5 = vector.shape_cast %4 : vector<1x32x96xbf16> to vector<32x96xbf16>
    %cst = arith.constant dense<0.000000e+00> : vector<8x96xf32>
    %6 = tpu.matmul %3, %5, %cst {dimension_numbers = #tpu.dot_dimension_numbers<[1], [0], [0], [1], [0, 0, 1, 1], [], []>} : vector<8x32xbf16>, vector<32x96xbf16>, vector<8x96xf32> -> vector<8x96xf32>
    %c0_5 = arith.constant 0 : index
    %c0_6 = arith.constant 0 : index
    %c0_7 = arith.constant 0 : index
    %7 = vector.load %arg7[%c0_5, %c0_6, %c0_7] : memref<1x1x96xf32, #tpu.memory_space<vmem>>, vector<1x1x96xf32>
    %8 = vector.shape_cast %7 : vector<1x1x96xf32> to vector<1x96xf32>
    %9 = vector.broadcast %8 : vector<1x96xf32> to vector<8x96xf32>
    %10 = arith.addf %6, %9 : vector<8x96xf32>
    %c0_8 = arith.constant 0 : index
    %c0_9 = arith.constant 0 : index
    %11 = vector.load %arg3[%c0_8, %c0_9] : memref<8x8xf32, #tpu.memory_space<vmem>>, vector<8x8xf32>
    %12 = vector.extract_strided_slice %10 {offsets = [0, 0], sizes = [8, 8], strides = [1, 1]} : vector<8x96xf32> to vector<8x8xf32>
    %13 = vector.extract_strided_slice %10 {offsets = [0, 8], sizes = [8, 8], strides = [1, 1]} : vector<8x96xf32> to vector<8x8xf32>
    %14 = vector.extract_strided_slice %10 {offsets = [0, 16], sizes = [8, 8], strides = [1, 1]} : vector<8x96xf32> to vector<8x8xf32>
    %15 = arith.truncf %13 : vector<8x8xf32> to vector<8x8xbf16>
    %16 = arith.truncf %12 : vector<8x8xf32> to vector<8x8xbf16>
    %cst_10 = arith.constant dense<0.000000e+00> : vector<8x8xf32>
    %17 = tpu.matmul %15, %16, %cst_10 {dimension_numbers = #tpu.dot_dimension_numbers<[1], [1], [0], [0], [0, 0, 1, 0], [], []>} : vector<8x8xbf16>, vector<8x8xbf16>, vector<8x8xf32> -> vector<8x8xf32>
    %cst_11 = arith.constant 0.353553385 : f32
    %18 = vector.broadcast %cst_11 : f32 to vector<8x8xf32>
    %19 = arith.mulf %17, %18 : vector<8x8xf32>
    %20 = arith.addf %19, %11 : vector<8x8xf32>
    %cst_12 = arith.constant dense<0xFF800000> : vector<8xf32>
    %21 = vector.multi_reduction <maximumf>, %20, %cst_12 [1] : vector<8x8xf32> to vector<8xf32>
    %22 = vector.shape_cast %21 : vector<8xf32> to vector<8x1xf32>
    %23 = vector.broadcast %22 : vector<8x1xf32> to vector<8x8xf32>
    %24 = arith.subf %20, %23 : vector<8x8xf32>
    %25 = math.exp %24 : vector<8x8xf32>
    %cst_13 = arith.constant dense<0.000000e+00> : vector<8xf32>
    %26 = vector.multi_reduction <add>, %25, %cst_13 [1] : vector<8x8xf32> to vector<8xf32>
    %27 = vector.shape_cast %26 : vector<8xf32> to vector<8x1xf32>
    %28 = tpu.reciprocal %27 {approx = true} : vector<8x1xf32> -> vector<8x1xf32>
    %29 = vector.broadcast %28 : vector<8x1xf32> to vector<8x8xf32>
    %30 = arith.mulf %25, %29 : vector<8x8xf32>
    %31 = arith.truncf %30 : vector<8x8xf32> to vector<8x8xbf16>
    %32 = arith.truncf %14 : vector<8x8xf32> to vector<8x8xbf16>
    %cst_14 = arith.constant dense<0.000000e+00> : vector<8x8xf32>
    %33 = tpu.matmul %31, %32, %cst_14 {dimension_numbers = #tpu.dot_dimension_numbers<[1], [0], [0], [1], [0, 0, 1, 1], [], []>} : vector<8x8xbf16>, vector<8x8xbf16>, vector<8x8xf32> -> vector<8x8xf32>
    %34 = vector.extract_strided_slice %10 {offsets = [0, 24], sizes = [8, 8], strides = [1, 1]} : vector<8x96xf32> to vector<8x8xf32>
    %35 = vector.extract_strided_slice %10 {offsets = [0, 32], sizes = [8, 8], strides = [1, 1]} : vector<8x96xf32> to vector<8x8xf32>
    %36 = vector.extract_strided_slice %10 {offsets = [0, 40], sizes = [8, 8], strides = [1, 1]} : vector<8x96xf32> to vector<8x8xf32>
    %37 = arith.truncf %35 : vector<8x8xf32> to vector<8x8xbf16>
    %38 = arith.truncf %34 : vector<8x8xf32> to vector<8x8xbf16>
    %cst_15 = arith.constant dense<0.000000e+00> : vector<8x8xf32>
    %39 = tpu.matmul %37, %38, %cst_15 {dimension_numbers = #tpu.dot_dimension_numbers<[1], [1], [0], [0], [0, 0, 1, 0], [], []>} : vector<8x8xbf16>, vector<8x8xbf16>, vector<8x8xf32> -> vector<8x8xf32>
    %cst_16 = arith.constant 0.353553385 : f32
    %40 = vector.broadcast %cst_16 : f32 to vector<8x8xf32>
    %41 = arith.mulf %39, %40 : vector<8x8xf32>
    %42 = arith.addf %41, %11 : vector<8x8xf32>
    %cst_17 = arith.constant dense<0xFF800000> : vector<8xf32>
    %43 = vector.multi_reduction <maximumf>, %42, %cst_17 [1] : vector<8x8xf32> to vector<8xf32>
    %44 = vector.shape_cast %43 : vector<8xf32> to vector<8x1xf32>
    %45 = vector.broadcast %44 : vector<8x1xf32> to vector<8x8xf32>
    %46 = arith.subf %42, %45 : vector<8x8xf32>
    %47 = math.exp %46 : vector<8x8xf32>
    %cst_18 = arith.constant dense<0.000000e+00> : vector<8xf32>
    %48 = vector.multi_reduction <add>, %47, %cst_18 [1] : vector<8x8xf32> to vector<8xf32>
    %49 = vector.shape_cast %48 : vector<8xf32> to vector<8x1xf32>
    %50 = tpu.reciprocal %49 {approx = true} : vector<8x1xf32> -> vector<8x1xf32>
    %51 = vector.broadcast %50 : vector<8x1xf32> to vector<8x8xf32>
    %52 = arith.mulf %47, %51 : vector<8x8xf32>
    %53 = arith.truncf %52 : vector<8x8xf32> to vector<8x8xbf16>
    %54 = arith.truncf %36 : vector<8x8xf32> to vector<8x8xbf16>
    %cst_19 = arith.constant dense<0.000000e+00> : vector<8x8xf32>
    %55 = tpu.matmul %53, %54, %cst_19 {dimension_numbers = #tpu.dot_dimension_numbers<[1], [0], [0], [1], [0, 0, 1, 1], [], []>} : vector<8x8xbf16>, vector<8x8xbf16>, vector<8x8xf32> -> vector<8x8xf32>
    %56 = vector.extract_strided_slice %10 {offsets = [0, 48], sizes = [8, 8], strides = [1, 1]} : vector<8x96xf32> to vector<8x8xf32>
    %57 = vector.extract_strided_slice %10 {offsets = [0, 56], sizes = [8, 8], strides = [1, 1]} : vector<8x96xf32> to vector<8x8xf32>
    %58 = vector.extract_strided_slice %10 {offsets = [0, 64], sizes = [8, 8], strides = [1, 1]} : vector<8x96xf32> to vector<8x8xf32>
    %59 = arith.truncf %57 : vector<8x8xf32> to vector<8x8xbf16>
    %60 = arith.truncf %56 : vector<8x8xf32> to vector<8x8xbf16>
    %cst_20 = arith.constant dense<0.000000e+00> : vector<8x8xf32>
    %61 = tpu.matmul %59, %60, %cst_20 {dimension_numbers = #tpu.dot_dimension_numbers<[1], [1], [0], [0], [0, 0, 1, 0], [], []>} : vector<8x8xbf16>, vector<8x8xbf16>, vector<8x8xf32> -> vector<8x8xf32>
    %cst_21 = arith.constant 0.353553385 : f32
    %62 = vector.broadcast %cst_21 : f32 to vector<8x8xf32>
    %63 = arith.mulf %61, %62 : vector<8x8xf32>
    %64 = arith.addf %63, %11 : vector<8x8xf32>
    %cst_22 = arith.constant dense<0xFF800000> : vector<8xf32>
    %65 = vector.multi_reduction <maximumf>, %64, %cst_22 [1] : vector<8x8xf32> to vector<8xf32>
    %66 = vector.shape_cast %65 : vector<8xf32> to vector<8x1xf32>
    %67 = vector.broadcast %66 : vector<8x1xf32> to vector<8x8xf32>
    %68 = arith.subf %64, %67 : vector<8x8xf32>
    %69 = math.exp %68 : vector<8x8xf32>
    %cst_23 = arith.constant dense<0.000000e+00> : vector<8xf32>
    %70 = vector.multi_reduction <add>, %69, %cst_23 [1] : vector<8x8xf32> to vector<8xf32>
    %71 = vector.shape_cast %70 : vector<8xf32> to vector<8x1xf32>
    %72 = tpu.reciprocal %71 {approx = true} : vector<8x1xf32> -> vector<8x1xf32>
    %73 = vector.broadcast %72 : vector<8x1xf32> to vector<8x8xf32>
    %74 = arith.mulf %69, %73 : vector<8x8xf32>
    %75 = arith.truncf %74 : vector<8x8xf32> to vector<8x8xbf16>
    %76 = arith.truncf %58 : vector<8x8xf32> to vector<8x8xbf16>
    %cst_24 = arith.constant dense<0.000000e+00> : vector<8x8xf32>
    %77 = tpu.matmul %75, %76, %cst_24 {dimension_numbers = #tpu.dot_dimension_numbers<[1], [0], [0], [1], [0, 0, 1, 1], [], []>} : vector<8x8xbf16>, vector<8x8xbf16>, vector<8x8xf32> -> vector<8x8xf32>
    %78 = vector.extract_strided_slice %10 {offsets = [0, 72], sizes = [8, 8], strides = [1, 1]} : vector<8x96xf32> to vector<8x8xf32>
    %79 = vector.extract_strided_slice %10 {offsets = [0, 80], sizes = [8, 8], strides = [1, 1]} : vector<8x96xf32> to vector<8x8xf32>
    %80 = vector.extract_strided_slice %10 {offsets = [0, 88], sizes = [8, 8], strides = [1, 1]} : vector<8x96xf32> to vector<8x8xf32>
    %81 = arith.truncf %79 : vector<8x8xf32> to vector<8x8xbf16>
    %82 = arith.truncf %78 : vector<8x8xf32> to vector<8x8xbf16>
    %cst_25 = arith.constant dense<0.000000e+00> : vector<8x8xf32>
    %83 = tpu.matmul %81, %82, %cst_25 {dimension_numbers = #tpu.dot_dimension_numbers<[1], [1], [0], [0], [0, 0, 1, 0], [], []>} : vector<8x8xbf16>, vector<8x8xbf16>, vector<8x8xf32> -> vector<8x8xf32>
    %cst_26 = arith.constant 0.353553385 : f32
    %84 = vector.broadcast %cst_26 : f32 to vector<8x8xf32>
    %85 = arith.mulf %83, %84 : vector<8x8xf32>
    %86 = arith.addf %85, %11 : vector<8x8xf32>
    %cst_27 = arith.constant dense<0xFF800000> : vector<8xf32>
    %87 = vector.multi_reduction <maximumf>, %86, %cst_27 [1] : vector<8x8xf32> to vector<8xf32>
    %88 = vector.shape_cast %87 : vector<8xf32> to vector<8x1xf32>
    %89 = vector.broadcast %88 : vector<8x1xf32> to vector<8x8xf32>
    %90 = arith.subf %86, %89 : vector<8x8xf32>
    %91 = math.exp %90 : vector<8x8xf32>
    %cst_28 = arith.constant dense<0.000000e+00> : vector<8xf32>
    %92 = vector.multi_reduction <add>, %91, %cst_28 [1] : vector<8x8xf32> to vector<8xf32>
    %93 = vector.shape_cast %92 : vector<8xf32> to vector<8x1xf32>
    %94 = tpu.reciprocal %93 {approx = true} : vector<8x1xf32> -> vector<8x1xf32>
    %95 = vector.broadcast %94 : vector<8x1xf32> to vector<8x8xf32>
    %96 = arith.mulf %91, %95 : vector<8x8xf32>
    %97 = arith.truncf %96 : vector<8x8xf32> to vector<8x8xbf16>
    %98 = arith.truncf %80 : vector<8x8xf32> to vector<8x8xbf16>
    %cst_29 = arith.constant dense<0.000000e+00> : vector<8x8xf32>
    %99 = tpu.matmul %97, %98, %cst_29 {dimension_numbers = #tpu.dot_dimension_numbers<[1], [0], [0], [1], [0, 0, 1, 1], [], []>} : vector<8x8xbf16>, vector<8x8xbf16>, vector<8x8xf32> -> vector<8x8xf32>
    %100 = tpu.concatenate %33, %55, %77, %99 in 1 : vector<8x8xf32>, vector<8x8xf32>, vector<8x8xf32>, vector<8x8xf32> -> vector<8x32xf32>
    %c0_30 = arith.constant 0 : index
    %c0_31 = arith.constant 0 : index
    %101 = vector.load %arg12[%c0_30, %c0_31] : memref<8x32xf32, #tpu.memory_space<vmem>>, vector<8x32xf32>
    %102 = arith.truncf %100 : vector<8x32xf32> to vector<8x32xbf16>
    %c0_32 = arith.constant 0 : index
    %c0_33 = arith.constant 0 : index
    %c0_34 = arith.constant 0 : index
    %103 = vector.load %arg8[%c0_32, %c0_33, %c0_34] : memref<1x32x32xbf16, #tpu.memory_space<vmem>>, vector<1x32x32xbf16>
    %104 = vector.shape_cast %103 : vector<1x32x32xbf16> to vector<32x32xbf16>
    %cst_35 = arith.constant dense<0.000000e+00> : vector<8x32xf32>
    %105 = tpu.matmul %102, %104, %cst_35 {dimension_numbers = #tpu.dot_dimension_numbers<[1], [0], [0], [1], [0, 0, 1, 1], [], []>} : vector<8x32xbf16>, vector<32x32xbf16>, vector<8x32xf32> -> vector<8x32xf32>
    %106 = arith.addf %101, %105 : vector<8x32xf32>
    %c0_36 = arith.constant 0 : index
    %c0_37 = arith.constant 0 : index
    %107 = vector.load %arg12[%c0_36, %c0_37] : memref<8x32xf32, #tpu.memory_space<vmem>>, vector<8x32xf32>
    tpu.vector_store %arg12[%c0_36, %c0_37], %106 {strides = array<i32>} : memref<8x32xf32, #tpu.memory_space<vmem>>, vector<8x32xf32>,
    %c0_i32_38 = arith.constant 0 : i32
    %108 = arith.cmpi eq, %arg1, %c0_i32_38 : i32
    %109 = arith.extui %108 : i1 to i32
    %c0_i32_39 = arith.constant 0 : i32
    %110 = arith.cmpi ne, %109, %c0_i32_39 : i32
    scf.if %110 {
      %c0_40 = arith.constant 0 : index
      %c0_41 = arith.constant 0 : index
      %c0_42 = arith.constant 0 : index
      %111 = vector.load %arg2[%c0_40, %c0_41, %c0_42] : memref<1x8x32xf32, #tpu.memory_space<vmem>>, vector<1x8x32xf32>
      %112 = vector.shape_cast %111 : vector<1x8x32xf32> to vector<8x32xf32>
      %c0_43 = arith.constant 0 : index
      %c0_44 = arith.constant 0 : index
      %113 = vector.load %arg12[%c0_43, %c0_44] : memref<8x32xf32, #tpu.memory_space<vmem>>, vector<8x32xf32>
      %114 = arith.addf %112, %113 : vector<8x32xf32>
      %c0_45 = arith.constant 0 : index
      %c0_46 = arith.constant 0 : index
      %115 = vector.load %arg9[%c0_45, %c0_46] : memref<1x32xf32, #tpu.memory_space<vmem>>, vector<1x32xf32>
      %116 = vector.broadcast %115 : vector<1x32xf32> to vector<8x32xf32>
      %117 = arith.addf %114, %116 : vector<8x32xf32>
      %c0_47 = arith.constant 0 : index
      %c0_48 = arith.constant 0 : index
      %c0_49 = arith.constant 0 : index
      %118 = vector.load %arg10[%c0_47, %c0_48, %c0_49] : memref<1x8x32xf32, #tpu.memory_space<vmem>>, vector<1x8x32xf32>
      %119 = vector.shape_cast %118 : vector<1x8x32xf32> to vector<8x32xf32>
      %120 = vector.shape_cast %117 : vector<8x32xf32> to vector<1x8x32xf32>
      tpu.vector_store %arg10[%c0_47, %c0_48, %c0_49], %120 {strides = array<i32>} : memref<1x8x32xf32, #tpu.memory_space<vmem>>, vector<1x8x32xf32>,
    } else {
    }
    return
  }
  func.func @transform_0(%arg0: i32, %arg1: i32) -> (i32, i32, i32) {
    %c0_i32 = arith.constant 0 : i32
    %c0_i32_0 = arith.constant 0 : i32
    %c0_i32_1 = arith.constant 0 : i32
    return %arg0, %c0_i32, %c0_i32_0 : i32, i32, i32
  }
  func.func @transform_1(%arg0: i32, %arg1: i32) -> (i32, i32) {
    %c0_i32 = arith.constant 0 : i32
    %c0_i32_0 = arith.constant 0 : i32
    %c0_i32_1 = arith.constant 0 : i32
    return %c0_i32, %c0_i32_0 : i32, i32
  }
  func.func @transform_2(%arg0: i32, %arg1: i32) -> (i32, i32) {
    %c0_i32 = arith.constant 0 : i32
    %c0_i32_0 = arith.constant 0 : i32
    %c0_i32_1 = arith.constant 0 : i32
    return %c0_i32, %c0_i32_0 : i32, i32
  }
  func.func @transform_3(%arg0: i32, %arg1: i32) -> (i32, i32) {
    %c0_i32 = arith.constant 0 : i32
    %c0_i32_0 = arith.constant 0 : i32
    %c0_i32_1 = arith.constant 0 : i32
    return %c0_i32, %c0_i32_0 : i32, i32
  }
  func.func @transform_4(%arg0: i32, %arg1: i32) -> (i32, i32, i32) {
    %c0_i32 = arith.constant 0 : i32
    %c0_i32_0 = arith.constant 0 : i32
    %c0_i32_1 = arith.constant 0 : i32
    return %arg1, %c0_i32, %c0_i32_0 : i32, i32, i32
  }
  func.func @transform_5(%arg0: i32, %arg1: i32) -> (i32, i32, i32) {
    %c0_i32 = arith.constant 0 : i32
    %c0_i32_0 = arith.constant 0 : i32
    %c0_i32_1 = arith.constant 0 : i32
    return %arg1, %c0_i32, %c0_i32_0 : i32, i32, i32
  }
  func.func @transform_6(%arg0: i32, %arg1: i32) -> (i32, i32, i32) {
    %c0_i32 = arith.constant 0 : i32
    %c0_i32_0 = arith.constant 0 : i32
    %c0_i32_1 = arith.constant 0 : i32
    return %arg1, %c0_i32, %c0_i32_0 : i32, i32, i32
  }
  func.func @transform_7(%arg0: i32, %arg1: i32) -> (i32, i32) {
    %c0_i32 = arith.constant 0 : i32
    %c0_i32_0 = arith.constant 0 : i32
    %c0_i32_1 = arith.constant 0 : i32
    return %c0_i32, %c0_i32_0 : i32, i32
  }
  func.func @transform_8(%arg0: i32, %arg1: i32) -> (i32, i32, i32) {
    %c0_i32 = arith.constant 0 : i32
    %c0_i32_0 = arith.constant 0 : i32
    %c0_i32_1 = arith.constant 0 : i32
    return %arg0, %c0_i32, %c0_i32_0 : i32, i32, i32
  }
}

</mosaic_0001>

<llo_original>
// kernel: tpu_custom_call.1
$region0: #{tpu_custom_call.1}
  #allocation0 [shape = 'u32[]', space=smem, size = 0x4, offset = 0x4, fixed_abs, tag = 'smem constant byte address 0x4 - core index']
  #allocation1 [shape = 'u32[144,128]{1,0:T(1,128)}', space=vmem, size = 0x12000, scoped, tag = 'internal scratch']
  #allocation2 [shape = 'bf16[8,32]{1,0:T(8,128)(2,1)}', space=vmem, size = 0x800, scoped, tag = 'scratch operand']
  #allocation3 [shape = 'f32[8,32]{1,0:T(8,128)}', space=vmem, size = 0x1000, scoped, tag = 'scratch operand']
  %s0 = inlined_call_operand.hbm [shape: f32[2,8,32], index: 0, kind: input, shape index: {}]
  %s1 = inlined_call_operand.hbm [shape: f32[8,8], index: 1, kind: input, shape index: {}]
  %s2 = inlined_call_operand.vmem [shape: f32[1,32], index: 2, kind: input, shape index: {}]
  %s3 = inlined_call_operand.vmem [shape: f32[1,32], index: 3, kind: input, shape index: {}]
  %s4 = inlined_call_operand.hbm [shape: bf16[1,32,96], index: 4, kind: input, shape index: {}]
  %s5 = inlined_call_operand.vmem [shape: f32[1,1,96], index: 5, kind: input, shape index: {}]
  %s6 = inlined_call_operand.hbm [shape: bf16[1,32,32], index: 6, kind: input, shape index: {}]
  %s7 = inlined_call_operand.vmem [shape: f32[1,32], index: 7, kind: input, shape index: {}]
  %s8 = inlined_call_operand.hbm [shape: f32[2,8,32], index: 8, kind: output, shape index: {}]
  %s9 = sld [smem:[#allocation0]]
  $region89: #{tpu_custom_call.1} parent=0
    _
  %s11 = ssub.s32 1, %s9
  %s12 = scalar_select 0, %s11, %s9
  $region1: #{tpu_custom_call.1} parent=0
    #allocation4 [shape = 'u8[8192]{0}', space=vmem, size = 0x2000, scoped, tag = 'input window, operand 0']
    #allocation5 [shape = 's32[2]{0}', space=sflag, size = 0x8, scoped, tag = 'scoped memory for tpu_custom_call.1']
    #allocation6 [shape = 's32[2]{0}', space=sflag, size = 0x8, scoped, tag = 'scoped memory for tpu_custom_call.1']
    #allocation7 [shape = 'u8[4096]{0}', space=vmem, size = 0x1000, scoped, tag = 'input window, operand 1, single buffered']
    #allocation8 [shape = 's32[1]{0}', space=sflag, size = 0x4, scoped, tag = 'scoped memory for tpu_custom_call.1']
    #allocation9 [shape = 'u8[8192]{0}', space=vmem, size = 0x2000, scoped, tag = 'input window, operand 4, single buffered']
    #allocation10 [shape = 'u8[8192]{0}', space=vmem, size = 0x2000, scoped, tag = 'input window, operand 6, single buffered']
    #allocation11 [shape = 's32[1]{0}', space=sflag, size = 0x4, scoped, tag = 'scoped memory for tpu_custom_call.1']
    #allocation12 [shape = 'u8[8192]{0}', space=vmem, size = 0x2000, scoped, tag = 'output window, operand 0']
    %13 = vsyncpa [#allocation5], 0
    %s14 = scalar_lea.sflag [#allocation5], 1
    %15 = vsyncpa %s14, 0
    %16 = vsyncpa [#allocation8], 0
    %17 = vsyncpa [#allocation11], 0
    %18 = vsyncpa [#allocation6], 0
    %s19 = scalar_lea.sflag [#allocation6], 1
    %20 = vsyncpa %s19, 0
    loop: start=0, step=1, limit=4
    $region2: #{tpu_custom_call.1} parent=1 // loop_pre_header
      _
    $region3: #{tpu_custom_call.1} parent=1 // loop_header
      %s22 = sphi 0, %s26
      %p23 = scmp.ge.s32.totalorder %s22, 4
      %s29 = sphi 0, %s41
      %s30 = sphi 0, %s37
      %s31 = sphi 0, %s29
      %s32 = sphi 0, %s30
      %s33 = sphi 0, %s31
      %s34 = sphi 0, %s32
      %s44 = sphi 0, %s46
      %s47 = sphi 0, %s44
      %s48 = sphi 0, %s47
      %s64 = sphi 0, %s48
      %s68 = sphi 0, %s68
      %s70 = sphi 0, %s68
      %s71 = sphi 0, %s70
      %s85 = sphi 0, %s71
      %s89 = sphi 0, %s89
      %s91 = sphi 0, %s89
      %s92 = sphi 0, %s91
      %s106 = sphi 0, %s92
      %s110 = sphi 0, %s110
      %s112 = sphi 0, %s110
      %s113 = sphi 0, %s112
      %s127 = sphi 0, %s113
      %s133 = sphi 0, %s135
      %s136 = sphi 0, %s133
      %s137 = sphi 0, %s136
      %s153 = sphi 0, %s137
      %s159 = sphi 0, %s161
      %s162 = sphi 0, %s159
      %s163 = sphi 0, %s162
      %s179 = sphi 0, %s163
      %s185 = sphi 0, %s187
      %s188 = sphi 0, %s185
      %s189 = sphi 0, %s188
      %s205 = sphi 0, %s189
      %s209 = sphi 0, %s209
      %s211 = sphi 0, %s209
      %s212 = sphi 0, %s211
      %s226 = sphi 0, %s212
      %s232 = sphi 0, %s234
      %s235 = sphi 0, %s232
      %s236 = sphi 0, %s235
      %s252 = sphi 0, %s236
    $region4: #{tpu_custom_call.1} parent=1 // loop_header_branch
      %25 = sbr.rel (%p23) target = $region8
    $region5: #{tpu_custom_call.1} parent=1 // loop_body
      %s27 = ssub.s32 %s22, 1
      %s28 = ssub.s32 %s22, 2
      %s35 = sadd.s32 1, %s30
      %p36 = scmp.ge.s32.totalorder %s35, 1
      %s37 = scalar_select %p36, 0, %s35
      %s38 = sadd.s32 1, %s29
      %s39 = scalar_select %p36, %s38, %s29
      %p40 = scmp.ge.s32.totalorder %s39, 2
      %s41 = scalar_select %p40, 0, %s39
      %s42 = ssub.s32 %s29, %s41
      %p43 = scmp.eq.s32.totalorder %s42, 0
      %s45 = sadd.s32 %s44, 1
      %s46 = scalar_select %p43, %s44, %s45
      %p49 = pneg %p43
      %p50 = scmp.eq.s32.totalorder %s22, 1
      %p51 = por %p49, %p50
      %p52 = scmp.ne.s32.totalorder %s44, %s47
      %p53 = scmp.eq.s32.totalorder %s22, 0
      %p54 = por %p52, %p53
      %p55 = scmp.ne.s32.totalorder %s44, %s47
      %p56 = scmp.eq.s32.totalorder %s27, 1
      %p57 = por %p55, %p56
      %p58 = scmp.ne.s32.totalorder %s47, %s48
      %p59 = scmp.eq.s32.totalorder %s27, 0
      %p60 = por %p58, %p59
      %p61 = scmp.ne.s32.totalorder %s47, %s48
      %p62 = scmp.eq.s32.totalorder %s28, 1
      %p63 = por %p61, %p62
      %p65 = scmp.ne.s32.totalorder %s48, %s64
      %p66 = scmp.eq.s32.totalorder %s28, 0
      %p67 = por %p65, %p66
      %s69 = sadd.s32 %s68, 1
      %p72 = scmp.eq.s32.totalorder %s22, 1
      %p73 = scmp.ne.s32.totalorder %s68, %s70
      %p74 = scmp.eq.s32.totalorder %s22, 0
      %p75 = por %p73, %p74
      %p76 = scmp.ne.s32.totalorder %s68, %s70
      %p77 = scmp.eq.s32.totalorder %s27, 1
      %p78 = por %p76, %p77
      %p79 = scmp.ne.s32.totalorder %s70, %s71
      %p80 = scmp.eq.s32.totalorder %s27, 0
      %p81 = por %p79, %p80
      %p82 = scmp.ne.s32.totalorder %s70, %s71
      %p83 = scmp.eq.s32.totalorder %s28, 1
      %p84 = por %p82, %p83
      %p86 = scmp.ne.s32.totalorder %s71, %s85
      %p87 = scmp.eq.s32.totalorder %s28, 0
      %p88 = por %p86, %p87
      %s90 = sadd.s32 %s89, 1
      %p93 = scmp.eq.s32.totalorder %s22, 1
      %p94 = scmp.ne.s32.totalorder %s89, %s91
      %p95 = scmp.eq.s32.totalorder %s22, 0
      %p96 = por %p94, %p95
      %p97 = scmp.ne.s32.totalorder %s89, %s91
      %p98 = scmp.eq.s32.totalorder %s27, 1
      %p99 = por %p97, %p98
      %p100 = scmp.ne.s32.totalorder %s91, %s92
      %p101 = scmp.eq.s32.totalorder %s27, 0
      %p102 = por %p100, %p101
      %p103 = scmp.ne.s32.totalorder %s91, %s92
      %p104 = scmp.eq.s32.totalorder %s28, 1
      %p105 = por %p103, %p104
      %p107 = scmp.ne.s32.totalorder %s92, %s106
      %p108 = scmp.eq.s32.totalorder %s28, 0
      %p109 = por %p107, %p108
      %s111 = sadd.s32 %s110, 1
      %p114 = scmp.eq.s32.totalorder %s22, 1
      %p115 = scmp.ne.s32.totalorder %s110, %s112
      %p116 = scmp.eq.s32.totalorder %s22, 0
      %p117 = por %p115, %p116
      %p118 = scmp.ne.s32.totalorder %s110, %s112
      %p119 = scmp.eq.s32.totalorder %s27, 1
      %p120 = por %p118, %p119
      %p121 = scmp.ne.s32.totalorder %s112, %s113
      %p122 = scmp.eq.s32.totalorder %s27, 0
      %p123 = por %p121, %p122
      %p124 = scmp.ne.s32.totalorder %s112, %s113
      %p125 = scmp.eq.s32.totalorder %s28, 1
      %p126 = por %p124, %p125
      %p128 = scmp.ne.s32.totalorder %s113, %s127
      %p129 = scmp.eq.s32.totalorder %s28, 0
      %p130 = por %p128, %p129
      %s131 = ssub.s32 %s30, %s37
      %p132 = scmp.eq.s32.totalorder %s131, 0
      %s134 = sadd.s32 %s133, 1
      %s135 = scalar_select %p132, %s133, %s134
      %p138 = pneg %p132
      %p139 = scmp.eq.s32.totalorder %s22, 1
      %p140 = por %p138, %p139
      %p141 = scmp.ne.s32.totalorder %s133, %s136
      %p142 = scmp.eq.s32.totalorder %s22, 0
      %p143 = por %p141, %p142
      %p144 = scmp.ne.s32.totalorder %s133, %s136
      %p145 = scmp.eq.s32.totalorder %s27, 1
      %p146 = por %p144, %p145
      %p147 = scmp.ne.s32.totalorder %s136, %s137
      %p148 = scmp.eq.s32.totalorder %s27, 0
      %p149 = por %p147, %p148
      %p150 = scmp.ne.s32.totalorder %s136, %s137
      %p151 = scmp.eq.s32.totalorder %s28, 1
      %p152 = por %p150, %p151
      %p154 = scmp.ne.s32.totalorder %s137, %s153
      %p155 = scmp.eq.s32.totalorder %s28, 0
      %p156 = por %p154, %p155
      %s157 = ssub.s32 %s30, %s37
      %p158 = scmp.eq.s32.totalorder %s157, 0
      %s160 = sadd.s32 %s159, 1
      %s161 = scalar_select %p158, %s159, %s160
      %p164 = pneg %p158
      %p165 = scmp.eq.s32.totalorder %s22, 1
      %p166 = por %p164, %p165
      %p167 = scmp.ne.s32.totalorder %s159, %s162
      %p168 = scmp.eq.s32.totalorder %s22, 0
      %p169 = por %p167, %p168
      %p170 = scmp.ne.s32.totalorder %s159, %s162
      %p171 = scmp.eq.s32.totalorder %s27, 1
      %p172 = por %p170, %p171
      %p173 = scmp.ne.s32.totalorder %s162, %s163
      %p174 = scmp.eq.s32.totalorder %s27, 0
      %p175 = por %p173, %p174
      %p176 = scmp.ne.s32.totalorder %s162, %s163
      %p177 = scmp.eq.s32.totalorder %s28, 1
      %p178 = por %p176, %p177
      %p180 = scmp.ne.s32.totalorder %s163, %s179
      %p181 = scmp.eq.s32.totalorder %s28, 0
      %p182 = por %p180, %p181
      %s183 = ssub.s32 %s30, %s37
      %p184 = scmp.eq.s32.totalorder %s183, 0
      %s186 = sadd.s32 %s185, 1
      %s187 = scalar_select %p184, %s185, %s186
      %p190 = pneg %p184
      %p191 = scmp.eq.s32.totalorder %s22, 1
      %p192 = por %p190, %p191
      %p193 = scmp.ne.s32.totalorder %s185, %s188
      %p194 = scmp.eq.s32.totalorder %s22, 0
      %p195 = por %p193, %p194
      %p196 = scmp.ne.s32.totalorder %s185, %s188
      %p197 = scmp.eq.s32.totalorder %s27, 1
      %p198 = por %p196, %p197
      %p199 = scmp.ne.s32.totalorder %s188, %s189
      %p200 = scmp.eq.s32.totalorder %s27, 0
      %p201 = por %p199, %p200
      %p202 = scmp.ne.s32.totalorder %s188, %s189
      %p203 = scmp.eq.s32.totalorder %s28, 1
      %p204 = por %p202, %p203
      %p206 = scmp.ne.s32.totalorder %s189, %s205
      %p207 = scmp.eq.s32.totalorder %s28, 0
      %p208 = por %p206, %p207
      %s210 = sadd.s32 %s209, 1
      %p213 = scmp.eq.s32.totalorder %s22, 1
      %p214 = scmp.ne.s32.totalorder %s209, %s211
      %p215 = scmp.eq.s32.totalorder %s22, 0
      %p216 = por %p214, %p215
      %p217 = scmp.ne.s32.totalorder %s209, %s211
      %p218 = scmp.eq.s32.totalorder %s27, 1
      %p219 = por %p217, %p218
      %p220 = scmp.ne.s32.totalorder %s211, %s212
      %p221 = scmp.eq.s32.totalorder %s27, 0
      %p222 = por %p220, %p221
      %p223 = scmp.ne.s32.totalorder %s211, %s212
      %p224 = scmp.eq.s32.totalorder %s28, 1
      %p225 = por %p223, %p224
      %p227 = scmp.ne.s32.totalorder %s212, %s226
      %p228 = scmp.eq.s32.totalorder %s28, 0
      %p229 = por %p227, %p228
      %s230 = ssub.s32 %s29, %s41
      %p231 = scmp.eq.s32.totalorder %s230, 0
      %s233 = sadd.s32 %s232, 1
      %s234 = scalar_select %p231, %s232, %s233
      %p237 = pneg %p231
      %p238 = scmp.eq.s32.totalorder %s22, 1
      %p239 = por %p237, %p238
      %p240 = scmp.ne.s32.totalorder %s232, %s235
      %p241 = scmp.eq.s32.totalorder %s22, 0
      %p242 = por %p240, %p241
      %p243 = scmp.ne.s32.totalorder %s232, %s235
      %p244 = scmp.eq.s32.totalorder %s27, 1
      %p245 = por %p243, %p244
      %p246 = scmp.ne.s32.totalorder %s235, %s236
      %p247 = scmp.eq.s32.totalorder %s27, 0
      %p248 = por %p246, %p247
      %p249 = scmp.ne.s32.totalorder %s235, %s236
      %p250 = scmp.eq.s32.totalorder %s28, 1
      %p251 = por %p249, %p250
      %p253 = scmp.ne.s32.totalorder %s236, %s252
      %p254 = scmp.eq.s32.totalorder %s28, 0
      %p255 = por %p253, %p254
      %p256 = scmp.le.s32.totalorder 1, %s22
      %p257 = scmp.lt.s32.totalorder %s22, 3
      %p258 = pnand %p256, %p257
      %p259 = pneg %p258
      // Predicated region
      $region9: #{tpu_custom_call.1} parent=5 // pred_check
        _
      $region10: #{tpu_custom_call.1} parent=5 // pred_check_branch
        %261 = sbr.rel (%p258) target = $region12
      $region11: #{tpu_custom_call.1} parent=5 // pred_region
        %s262 = ssub.s32 %s22, 1
        // Predicated region
        $region13: #{tpu_custom_call.1} parent=11 // pred_check
          %p263 = pneg %p81
        $region14: #{tpu_custom_call.1} parent=11 // pred_check_branch
          %265 = sbr.rel (%p263) target = $region16
        $region15: #{tpu_custom_call.1} parent=11 // pred_region
          %s267 = ssub.s32 128, 128
          %268 = vsyncadd [#allocation8], %s267
          %s270 = sshll.u32 [#allocation7], 4
          %s271 = int_to_ptr.vmem [resolvable:$true] %s270
          %273 = dma.hbm_to_vmem [thread:$0]  %s1, 128, %s271, [#allocation8]
        $region16: #{tpu_custom_call.1} parent=11 // pred_fallthru
          _
        // Predicated region
        $region17: #{tpu_custom_call.1} parent=11 // pred_check
          %p274 = pneg %p102
        $region18: #{tpu_custom_call.1} parent=11 // pred_check_branch
          %276 = sbr.rel (%p274) target = $region20
        $region19: #{tpu_custom_call.1} parent=11 // pred_region
          _
        $region20: #{tpu_custom_call.1} parent=11 // pred_fallthru
          _
        // Predicated region
        $region21: #{tpu_custom_call.1} parent=11 // pred_check
          %p277 = pneg %p123
        $region22: #{tpu_custom_call.1} parent=11 // pred_check_branch
          %279 = sbr.rel (%p277) target = $region24
        $region23: #{tpu_custom_call.1} parent=11 // pred_region
          _
        $region24: #{tpu_custom_call.1} parent=11 // pred_fallthru
          _
        // Predicated region
        $region25: #{tpu_custom_call.1} parent=11 // pred_check
          %p280 = pneg %p149
        $region26: #{tpu_custom_call.1} parent=11 // pred_check_branch
          %282 = sbr.rel (%p280) target = $region28
        $region27: #{tpu_custom_call.1} parent=11 // pred_region
          %s284 = ssub.s32 256, 256
          %285 = vsyncadd [#allocation8], %s284
          %s286 = smul.addr %s32, 4
          %s287 = smul.addr %s286, 64
          %s288 = scalar_lea.hbm %s4, %s287
          %s289 = sshll.u32 [#allocation9], 4
          %s290 = int_to_ptr.vmem [resolvable:$true] %s289
          %295 = dma.hbm_to_vmem [thread:$0]  %s288, 256, %s290, [#allocation8], 64, 64, 4
        $region28: #{tpu_custom_call.1} parent=11 // pred_fallthru
          _
        // Predicated region
        $region29: #{tpu_custom_call.1} parent=11 // pred_check
          %p296 = pneg %p175
        $region30: #{tpu_custom_call.1} parent=11 // pred_check_branch
          %298 = sbr.rel (%p296) target = $region32
        $region31: #{tpu_custom_call.1} parent=11 // pred_region
          %p299 = scmp.lt.s32.totalorder %s32, 0
          %s300 = scalar_select %p299, %s32, 0
          %s301 = scalar_lea.vmem %s5, %s300
        $region32: #{tpu_custom_call.1} parent=11 // pred_fallthru
          _
        // Predicated region
        $region33: #{tpu_custom_call.1} parent=11 // pred_check
          %p302 = pneg %p201
        $region34: #{tpu_custom_call.1} parent=11 // pred_check_branch
          %304 = sbr.rel (%p302) target = $region36
        $region35: #{tpu_custom_call.1} parent=11 // pred_region
          %s306 = ssub.s32 256, 256
          %307 = vsyncadd [#allocation11], %s306
          %s308 = smul.addr %s32, 4
          %s309 = smul.addr %s308, 64
          %s310 = scalar_lea.hbm %s6, %s309
          %s311 = sshll.u32 [#allocation10], 4
          %s312 = int_to_ptr.vmem [resolvable:$true] %s311
          %317 = dma.hbm_to_vmem [thread:$0]  %s310, 256, %s312, [#allocation11], 64, 64, 4
        $region36: #{tpu_custom_call.1} parent=11 // pred_fallthru
          _
        // Predicated region
        $region37: #{tpu_custom_call.1} parent=11 // pred_check
          %p318 = pneg %p222
        $region38: #{tpu_custom_call.1} parent=11 // pred_check_branch
          %320 = sbr.rel (%p318) target = $region40
        $region39: #{tpu_custom_call.1} parent=11 // pred_region
          _
        $region40: #{tpu_custom_call.1} parent=11 // pred_fallthru
          _
      $region12: #{tpu_custom_call.1} parent=5 // pred_fallthru
        _
      %p321 = scmp.lt.s32.totalorder %s22, 2
      // Predicated region
      $region41: #{tpu_custom_call.1} parent=5 // pred_check
        %p322 = pneg %p321
      $region42: #{tpu_custom_call.1} parent=5 // pred_check_branch
        %324 = sbr.rel (%p322) target = $region44
      $region43: #{tpu_custom_call.1} parent=5 // pred_region
        // Predicated region
        $region45: #{tpu_custom_call.1} parent=43 // pred_check
          %p325 = pneg %p54
        $region46: #{tpu_custom_call.1} parent=43 // pred_check_branch
          %327 = sbr.rel (%p325) target = $region48
        $region47: #{tpu_custom_call.1} parent=43 // pred_region
          %s328 = sand.u32 %s44, 1
          %s329 = scalar_lea.sflag [#allocation5], %s328
          %s330 = sand.u32 %s44, 1
          %s331 = smul.addr %s330, 8
          %s332 = scalar_lea.vmem [#allocation4], %s331
          %s334 = ssub.s32 128, 128
          %335 = vsyncadd %s329, %s334
          %s336 = smul.addr %s29, 128
          %s337 = scalar_lea.hbm %s0, %s336
          %s339 = sshll.u32 %s332, 4
          %s340 = int_to_ptr.vmem [resolvable:$true] %s339
          %342 = dma.hbm_to_vmem [thread:$0]  %s337, 128, %s340, %s329
        $region48: #{tpu_custom_call.1} parent=43 // pred_fallthru
          _
      $region44: #{tpu_custom_call.1} parent=5 // pred_fallthru
        _
      %p343 = scmp.le.s32.totalorder 1, %s22
      %p344 = scmp.lt.s32.totalorder %s22, 3
      %p345 = pnand %p343, %p344
      %p346 = pneg %p345
      // Predicated region
      $region49: #{tpu_custom_call.1} parent=5 // pred_check
        _
      $region50: #{tpu_custom_call.1} parent=5 // pred_check_branch
        %348 = sbr.rel (%p345) target = $region52
      $region51: #{tpu_custom_call.1} parent=5 // pred_region
        %s349 = ssub.s32 %s22, 1
        %s350 = sand.u32 %s47, 1
        %s351 = scalar_lea.sflag [#allocation5], %s350
        %s352 = sand.u32 %s47, 1
        %s353 = smul.addr %s352, 8
        %s354 = scalar_lea.vmem [#allocation4], %s353
        // Predicated region
        $region53: #{tpu_custom_call.1} parent=51 // pred_check
          %p355 = pneg %p60
        $region54: #{tpu_custom_call.1} parent=51 // pred_check_branch
          %357 = sbr.rel (%p355) target = $region56
        $region55: #{tpu_custom_call.1} parent=51 // pred_region
          %358 = dma.done %s351, 128
        $region56: #{tpu_custom_call.1} parent=51 // pred_fallthru
          _
        // Predicated region
        $region57: #{tpu_custom_call.1} parent=51 // pred_check
          %p359 = pneg %p81
        $region58: #{tpu_custom_call.1} parent=51 // pred_check_branch
          %361 = sbr.rel (%p359) target = $region60
        $region59: #{tpu_custom_call.1} parent=51 // pred_region
          %362 = dma.done [#allocation8], 128
        $region60: #{tpu_custom_call.1} parent=51 // pred_fallthru
          _
        // Predicated region
        $region61: #{tpu_custom_call.1} parent=51 // pred_check
          %p363 = pneg %p149
        $region62: #{tpu_custom_call.1} parent=51 // pred_check_branch
          %365 = sbr.rel (%p363) target = $region64
        $region63: #{tpu_custom_call.1} parent=51 // pred_region
          %366 = dma.done [#allocation8], 256
        $region64: #{tpu_custom_call.1} parent=51 // pred_fallthru
          _
        // Predicated region
        $region65: #{tpu_custom_call.1} parent=51 // pred_check
          %p367 = pneg %p201
        $region66: #{tpu_custom_call.1} parent=51 // pred_check_branch
          %369 = sbr.rel (%p367) target = $region68
        $region67: #{tpu_custom_call.1} parent=51 // pred_region
          %370 = dma.done [#allocation11], 256
        $region68: #{tpu_custom_call.1} parent=51 // pred_fallthru
          _
        %s371 = sand.u32 %s47, 1
        %s372 = scalar_lea.sflag [#allocation5], %s371
        %s373 = sand.u32 %s47, 1
        %s374 = smul.addr %s373, 8
        %s375 = scalar_lea.vmem [#allocation4], %s374
        %p376 = pneg %p60
        %p377 = pneg %p57
        %p378 = pneg %p81
        %p379 = pneg %p78
        %p380 = pneg %p102
        %p381 = pneg %p99
        %p382 = pneg %p123
        %p383 = pneg %p120
        %p384 = pneg %p149
        %p385 = pneg %p146
        %p386 = scmp.lt.s32.totalorder %s32, 0
        %s387 = scalar_select %p386, %s32, 0
        %s388 = scalar_lea.vmem %s5, %s387
        %p389 = pneg %p175
        %p390 = pneg %p172
        %p391 = pneg %p201
        %p392 = pneg %p198
        %p393 = pneg %p222
        %p394 = pneg %p219
        %p395 = pneg %p248
        %p396 = pneg %p245
        %s397 = sand.u32 %s235, 1
        %s398 = scalar_lea.sflag [#allocation6], %s397
        %s399 = sand.u32 %s235, 1
        %s400 = smul.addr %s399, 8
        %s401 = scalar_lea.vmem [#allocation12], %s400
        %p402 = scmp.lt.s32.totalorder %s32, 0
        %s403 = scalar_select %p402, %s32, 0
        %s404 = scalar_lea.vmem %s5, %s403
        %p406 = scmp.eq.s32.totalorder %s32, 0
        // Predicated region
        $region69: #{tpu_custom_call.1} parent=51 // pred_check
          %p407 = pneg %p406
        $region70: #{tpu_custom_call.1} parent=51 // pred_check_branch
          %409 = sbr.rel (%p407) target = $region72
        $region71: #{tpu_custom_call.1} parent=51 // pred_region
          %v410 = vld [vmem:[%s354] sm:$0xff]
          %v411 = vld [vmem:[%s2] sm:$0x1]
          %v412 = vld [vmem:[%s3] sm:$0x1]
          %vm413 = vcmask 261120
          %v414 = vsel %vm413, %v410, 0.0
          %415 = vadd.xlane.f32.xlu0 %v414
          %v416 = vpop.xlane.xlu0 %415
          %v417 = vrcp.pop 32.0
          %v418 = vmul.f32 %v416, %v417
          %v419 = vsub.f32 %v410, %v418
          %v420 = vmul.f32 %v419, %v419
          %v421 = vsel %vm413, %v420, 0.0
          %422 = vadd.xlane.f32.xlu0 %v421
          %v423 = vpop.xlane.xlu0 %422
          %v424 = vmul.f32 %v423, %v417
          %v425 = vadd.f32 %v424, 1e-05
          %v426 = vrsqrt.pop %v425
          %v427 = vmul.f32 %v419, %v426
          %v429 = vlaneseq
          %v430 = vshrl.u32 %v429, 7
          %v431 = vsub.s32 0, %v430
          %v432 = vrot.slane %v411, %v431
          %v434 = vmul.f32 %v427, %v432
          %v436 = vlaneseq
          %v437 = vshrl.u32 %v436, 7
          %v438 = vsub.s32 0, %v437
          %v439 = vrot.slane %v412, %v438
          %v441 = vadd.f32 %v434, %v439
          %v442 = vpack.c.bf16 %v441, %v441
          %vm443 = vcmask 257024
          %444 = vst.msk [vmem:[#allocation2] sm:$0xf] %vm443, %v442
          %445 = vst.msk [vmem:[#allocation3] sm:$0xff] %vm413, 0.0
        $region72: #{tpu_custom_call.1} parent=51 // pred_fallthru
          _
        %v446 = vld [vmem:[#allocation2] sm:$0xf]
        %v447 = vld [vmem:[#allocation9] sm:$0xf]
        %v448 = vld [vmem:[#allocation9 + $0x4] sm:$0xf]
        %v449 = vld [vmem:[#allocation9 + $0x8] sm:$0xf]
        %v450 = vld [vmem:[#allocation9 + $0xc] sm:$0xf]
        %v451 = vld [vmem:[%s404] sm:$0x1]
        %v453 = vlaneseq
        %v454 = vshrl.u32 %v453, 7
        %v455 = vsub.s32 0, %v454
        %v456 = vrot.slane %v451, %v455
        %v462 = vunpack.c.l.b16 %v447
        %v463 = vunpack.c.l.b16 %v448
        %v464 = vunpack.c.l.b16 %v449
        %v465 = vunpack.c.l.b16 %v450
        %v466 = vpack.c.b16 %v463, %v462
        %v467 = vpack.c.b16 %v465, %v464
        %vm470 = vcmask 261120
        %v472 = vsel %vm470, %v446, 0
        %474 = vmatprep.subr.bf16.mxu0 0
        %475 = vmatpush1.bf16.msra.mxu0 0
        %476 = vmatprep.subr.bf16.mxu0 0
        %477 = vmatpush1.bf16.msra.mxu0 0
        %478 = vmatprep.subr.bf16.mxu0 0
        %479 = vmatpush1.bf16.msra.mxu0 0
        %480 = vmatprep.subr.bf16.mxu0 0
        %481 = vmatpush1.bf16.msra.mxu0 0
        %482 = vmatprep.subr.bf16.mxu0 0
        %483 = vmatpush1.bf16.msra.mxu0 0
        %484 = vmatprep.subr.bf16.mxu0 0
        %485 = vmatpush1.bf16.msra.mxu0 0
        %486 = vmatprep.subr.bf16.mxu0 0
        %487 = vmatpush1.bf16.msra.mxu0 %v467
        %488 = vmatprep.subr.bf16.mxu0 0
        %489 = vmatpush1.bf16.msra.mxu0 %v466
        %490 = vmatprep.subr.bf16.mxu0 0
        %491 = vmatpush2.bf16.msra.mxu0 0
        %492 = vmatprep.subr.bf16.mxu0 0
        %493 = vmatpush2.bf16.msra.mxu0 0
        %494 = vmatprep.subr.bf16.mxu0 0
        %495 = vmatpush2.bf16.msra.mxu0 0
        %496 = vmatprep.subr.bf16.mxu0 0
        %497 = vmatpush2.bf16.msra.mxu0 0
        %498 = vmatprep.subr.bf16.mxu0 0
        %499 = vmatpush2.bf16.msra.mxu0 0
        %500 = vmatprep.subr.bf16.mxu0 0
        %501 = vmatpush2.bf16.msra.mxu0 0
        %502 = vmatprep.subr.bf16.mxu0 0
        %503 = vmatpush2.bf16.msra.mxu0 0
        %504 = vmatprep.subr.bf16.mxu0 0
        %505 = vmatpush2.bf16.msra.mxu0 0
        %506 = vmatprep.mubr.bf16.mxu0 0
        %507 = vmatmul.mubr.bf16.gmra.mxu0 %v472
        %v508 = vpop.f32.mrf.mxu0
        %v509 = vadd.f32 %v456, %v508
        %v510 = vpop.f32.mrf.mxu0
        %v511 = vpop.f32.mrf.mxu0
        %v512 = vpop.f32.mrf.mxu0
        %513 = vdwg.mxu0
        %v514 = vld [vmem:[#allocation7] sm:$0xff]
        %v515 = vpack.c.bf16 %v509, %v509
        %517 = vrot.lane.b32.xlu0 %v515, 120
        %v518 = vpop.permute.xlu0 %517
        %vm519 = vcmask 64512
        %v521 = vsel %vm519, %v518, 0
        %v524 = vsel %vm519, %v515, 0
        %526 = vmatprep.subr.bf16.mxu0 0
        %527 = vmatpush1.bf16.xpose.msra.mxu0 0
        %528 = vmatprep.subr.bf16.mxu0 0
        %529 = vmatpush1.bf16.xpose.msra.mxu0 0
        %530 = vmatprep.subr.bf16.mxu0 0
        %531 = vmatpush1.bf16.xpose.msra.mxu0 0
        %532 = vmatprep.subr.bf16.mxu0 0
        %533 = vmatpush1.bf16.xpose.msra.mxu0 0
        %534 = vmatprep.subr.bf16.mxu0 0
        %535 = vmatpush1.bf16.xpose.msra.mxu0 0
        %536 = vmatprep.subr.bf16.mxu0 0
        %537 = vmatpush1.bf16.xpose.msra.mxu0 0
        %538 = vmatprep.subr.bf16.mxu0 0
        %539 = vmatpush1.bf16.xpose.msra.mxu0 0
        %540 = vmatprep.subr.bf16.mxu0 0
        %541 = vmatpush1.bf16.xpose.msra.mxu0 %v524
        %542 = vmatprep.subr.bf16.mxu0 0
        %543 = vmatpush2.bf16.xpose.msra.mxu0 0
        %544 = vmatprep.subr.bf16.mxu0 0
        %545 = vmatpush2.bf16.xpose.msra.mxu0 0
        %546 = vmatprep.subr.bf16.mxu0 0
        %547 = vmatpush2.bf16.xpose.msra.mxu0 0
        %548 = vmatprep.subr.bf16.mxu0 0
        %549 = vmatpush2.bf16.xpose.msra.mxu0 0
        %550 = vmatprep.subr.bf16.mxu0 0
        %551 = vmatpush2.bf16.xpose.msra.mxu0 0
        %552 = vmatprep.subr.bf16.mxu0 0
        %553 = vmatpush2.bf16.xpose.msra.mxu0 0
        %554 = vmatprep.subr.bf16.mxu0 0
        %555 = vmatpush2.bf16.xpose.msra.mxu0 0
        %556 = vmatprep.subr.bf16.mxu0 0
        %557 = vmatpush2.bf16.xpose.msra.mxu0 0
        %558 = vmatprep.mubr.bf16.mxu0 0
        %559 = vmatmul.mubr.bf16.gmra.mxu0 %v521
        %v560 = vpop.f32.mrf.mxu0
        %v561 = vadd.f32 0.0, %v560
        %v562 = vpop.f32.mrf.mxu0
        %v563 = vpop.f32.mrf.mxu0
        %v564 = vpop.f32.mrf.mxu0
        %565 = vdwg.mxu0
        %v566 = vmul.f32 %v561, 0.35355338
        %v567 = vadd.f32 %v566, %v514
        %v568 = vsel %vm519, %v567, -inf
        %569 = vmax.xlane.f32.xlu0 %v568
        %v570 = vpop.xlane.xlu0 %569
        %v571 = vsub.f32 %v567, %v570
        %v572 = vmul.f32 %v571, 1.442695
        %v573 = vpow.pop %v572
        %v574 = vsel %vm519, %v573, 0.0
        %575 = vadd.xlane.f32.xlu0 %v574
        %v576 = vpop.xlane.xlu0 %575
        %v577 = vrcp.pop %v576
        %v578 = vmul.f32 %v573, %v577
        %v579 = vpack.c.bf16 %v578, %v578
        %580 = vrot.lane.b32.xlu0 %v515, 112
        %v581 = vpop.permute.xlu0 %580
        %v583 = vsel %vm519, %v579, 0
        %vm585 = vcmask 1043456
        %v587 = vsel %vm585, %v581, 0
        %589 = vmatprep.subr.bf16.mxu0 0
        %590 = vmatpush1.bf16.msra.mxu0 0
        %591 = vmatprep.subr.bf16.mxu0 0
        %592 = vmatpush1.bf16.msra.mxu0 0
        %593 = vmatprep.subr.bf16.mxu0 0
        %594 = vmatpush1.bf16.msra.mxu0 0
        %595 = vmatprep.subr.bf16.mxu0 0
        %596 = vmatpush1.bf16.msra.mxu0 0
        %597 = vmatprep.subr.bf16.mxu0 0
        %598 = vmatpush1.bf16.msra.mxu0 0
        %599 = vmatprep.subr.bf16.mxu0 0
        %600 = vmatpush1.bf16.msra.mxu0 0
        %601 = vmatprep.subr.bf16.mxu0 0
        %602 = vmatpush1.bf16.msra.mxu0 0
        %603 = vmatprep.subr.bf16.mxu0 0
        %604 = vmatpush1.bf16.msra.mxu0 %v587
        %605 = vmatprep.subr.bf16.mxu0 0
        %606 = vmatpush2.bf16.msra.mxu0 0
        %607 = vmatprep.subr.bf16.mxu0 0
        %608 = vmatpush2.bf16.msra.mxu0 0
        %609 = vmatprep.subr.bf16.mxu0 0
        %610 = vmatpush2.bf16.msra.mxu0 0
        %611 = vmatprep.subr.bf16.mxu0 0
        %612 = vmatpush2.bf16.msra.mxu0 0
        %613 = vmatprep.subr.bf16.mxu0 0
        %614 = vmatpush2.bf16.msra.mxu0 0
        %615 = vmatprep.subr.bf16.mxu0 0
        %616 = vmatpush2.bf16.msra.mxu0 0
        %617 = vmatprep.subr.bf16.mxu0 0
        %618 = vmatpush2.bf16.msra.mxu0 0
        %619 = vmatprep.subr.bf16.mxu0 0
        %620 = vmatpush2.bf16.msra.mxu0 0
        %621 = vmatprep.mubr.bf16.mxu0 0
        %622 = vmatmul.mubr.bf16.gmra.mxu0 %v583
        %v623 = vpop.f32.mrf.mxu0
        %v624 = vadd.f32 0.0, %v623
        %v625 = vpop.f32.mrf.mxu0
        %v626 = vpop.f32.mrf.mxu0
        %v627 = vpop.f32.mrf.mxu0
        %628 = vdwg.mxu0
        %629 = vrot.lane.b32.xlu0 %v515, 96
        %v630 = vpop.permute.xlu0 %629
        %631 = vrot.lane.b32.xlu0 %v515, 104
        %v632 = vpop.permute.xlu0 %631
        %v634 = vsel %vm519, %v630, 0
        %v637 = vsel %vm519, %v632, 0
        %639 = vmatprep.subr.bf16.mxu0 0
        %640 = vmatpush1.bf16.xpose.msra.mxu0 0
        %641 = vmatprep.subr.bf16.mxu0 0
        %642 = vmatpush1.bf16.xpose.msra.mxu0 0
        %643 = vmatprep.subr.bf16.mxu0 0
        %644 = vmatpush1.bf16.xpose.msra.mxu0 0
        %645 = vmatprep.subr.bf16.mxu0 0
        %646 = vmatpush1.bf16.xpose.msra.mxu0 0
        %647 = vmatprep.subr.bf16.mxu0 0
        %648 = vmatpush1.bf16.xpose.msra.mxu0 0
        %649 = vmatprep.subr.bf16.mxu0 0
        %650 = vmatpush1.bf16.xpose.msra.mxu0 0
        %651 = vmatprep.subr.bf16.mxu0 0
        %652 = vmatpush1.bf16.xpose.msra.mxu0 0
        %653 = vmatprep.subr.bf16.mxu0 0
        %654 = vmatpush1.bf16.xpose.msra.mxu0 %v637
        %655 = vmatprep.subr.bf16.mxu0 0
        %656 = vmatpush2.bf16.xpose.msra.mxu0 0
        %657 = vmatprep.subr.bf16.mxu0 0
        %658 = vmatpush2.bf16.xpose.msra.mxu0 0
        %659 = vmatprep.subr.bf16.mxu0 0
        %660 = vmatpush2.bf16.xpose.msra.mxu0 0
        %661 = vmatprep.subr.bf16.mxu0 0
        %662 = vmatpush2.bf16.xpose.msra.mxu0 0
        %663 = vmatprep.subr.bf16.mxu0 0
        %664 = vmatpush2.bf16.xpose.msra.mxu0 0
        %665 = vmatprep.subr.bf16.mxu0 0
        %666 = vmatpush2.bf16.xpose.msra.mxu0 0
        %667 = vmatprep.subr.bf16.mxu0 0
        %668 = vmatpush2.bf16.xpose.msra.mxu0 0
        %669 = vmatprep.subr.bf16.mxu0 0
        %670 = vmatpush2.bf16.xpose.msra.mxu0 0
        %671 = vmatprep.mubr.bf16.mxu0 0
        %672 = vmatmul.mubr.bf16.gmra.mxu0 %v634
        %v673 = vpop.f32.mrf.mxu0
        %v674 = vadd.f32 0.0, %v673
        %v675 = vpop.f32.mrf.mxu0
        %v676 = vpop.f32.mrf.mxu0
        %v677 = vpop.f32.mrf.mxu0
        %678 = vdwg.mxu0
        %v679 = vmul.f32 %v674, 0.35355338
        %v680 = vadd.f32 %v679, %v514
        %v681 = vsel %vm519, %v680, -inf
        %682 = vmax.xlane.f32.xlu0 %v681
        %v683 = vpop.xlane.xlu0 %682
        %v684 = vsub.f32 %v680, %v683
        %v685 = vmul.f32 %v684, 1.442695
        %v686 = vpow.pop %v685
        %v687 = vsel %vm519, %v686, 0.0
        %688 = vadd.xlane.f32.xlu0 %v687
        %v689 = vpop.xlane.xlu0 %688
        %v690 = vrcp.pop %v689
        %v691 = vmul.f32 %v686, %v690
        %v692 = vpack.c.bf16 %v691, %v691
        %693 = vrot.lane.b32.xlu0 %v515, 88
        %v694 = vpop.permute.xlu0 %693
        %v696 = vsel %vm519, %v692, 0
        %v699 = vsel %vm585, %v694, 0
        %701 = vmatprep.subr.bf16.mxu0 0
        %702 = vmatpush1.bf16.msra.mxu0 0
        %703 = vmatprep.subr.bf16.mxu0 0
        %704 = vmatpush1.bf16.msra.mxu0 0
        %705 = vmatprep.subr.bf16.mxu0 0
        %706 = vmatpush1.bf16.msra.mxu0 0
        %707 = vmatprep.subr.bf16.mxu0 0
        %708 = vmatpush1.bf16.msra.mxu0 0
        %709 = vmatprep.subr.bf16.mxu0 0
        %710 = vmatpush1.bf16.msra.mxu0 0
        %711 = vmatprep.subr.bf16.mxu0 0
        %712 = vmatpush1.bf16.msra.mxu0 0
        %713 = vmatprep.subr.bf16.mxu0 0
        %714 = vmatpush1.bf16.msra.mxu0 0
        %715 = vmatprep.subr.bf16.mxu0 0
        %716 = vmatpush1.bf16.msra.mxu0 %v699
        %717 = vmatprep.subr.bf16.mxu0 0
        %718 = vmatpush2.bf16.msra.mxu0 0
        %719 = vmatprep.subr.bf16.mxu0 0
        %720 = vmatpush2.bf16.msra.mxu0 0
        %721 = vmatprep.subr.bf16.mxu0 0
        %722 = vmatpush2.bf16.msra.mxu0 0
        %723 = vmatprep.subr.bf16.mxu0 0
        %724 = vmatpush2.bf16.msra.mxu0 0
        %725 = vmatprep.subr.bf16.mxu0 0
        %726 = vmatpush2.bf16.msra.mxu0 0
        %727 = vmatprep.subr.bf16.mxu0 0
        %728 = vmatpush2.bf16.msra.mxu0 0
        %729 = vmatprep.subr.bf16.mxu0 0
        %730 = vmatpush2.bf16.msra.mxu0 0
        %731 = vmatprep.subr.bf16.mxu0 0
        %732 = vmatpush2.bf16.msra.mxu0 0
        %733 = vmatprep.mubr.bf16.mxu0 0
        %734 = vmatmul.mubr.bf16.gmra.mxu0 %v696
        %v735 = vpop.f32.mrf.mxu0
        %v736 = vadd.f32 0.0, %v735
        %v737 = vpop.f32.mrf.mxu0
        %v738 = vpop.f32.mrf.mxu0
        %v739 = vpop.f32.mrf.mxu0
        %740 = vdwg.mxu0
        %741 = vrot.lane.b32.xlu0 %v515, 72
        %v742 = vpop.permute.xlu0 %741
        %743 = vrot.lane.b32.xlu0 %v515, 80
        %v744 = vpop.permute.xlu0 %743
        %v746 = vsel %vm519, %v742, 0
        %v749 = vsel %vm519, %v744, 0
        %751 = vmatprep.subr.bf16.mxu0 0
        %752 = vmatpush1.bf16.xpose.msra.mxu0 0
        %753 = vmatprep.subr.bf16.mxu0 0
        %754 = vmatpush1.bf16.xpose.msra.mxu0 0
        %755 = vmatprep.subr.bf16.mxu0 0
        %756 = vmatpush1.bf16.xpose.msra.mxu0 0
        %757 = vmatprep.subr.bf16.mxu0 0
        %758 = vmatpush1.bf16.xpose.msra.mxu0 0
        %759 = vmatprep.subr.bf16.mxu0 0
        %760 = vmatpush1.bf16.xpose.msra.mxu0 0
        %761 = vmatprep.subr.bf16.mxu0 0
        %762 = vmatpush1.bf16.xpose.msra.mxu0 0
        %763 = vmatprep.subr.bf16.mxu0 0
        %764 = vmatpush1.bf16.xpose.msra.mxu0 0
        %765 = vmatprep.subr.bf16.mxu0 0
        %766 = vmatpush1.bf16.xpose.msra.mxu0 %v749
        %767 = vmatprep.subr.bf16.mxu0 0
        %768 = vmatpush2.bf16.xpose.msra.mxu0 0
        %769 = vmatprep.subr.bf16.mxu0 0
        %770 = vmatpush2.bf16.xpose.msra.mxu0 0
        %771 = vmatprep.subr.bf16.mxu0 0
        %772 = vmatpush2.bf16.xpose.msra.mxu0 0
        %773 = vmatprep.subr.bf16.mxu0 0
        %774 = vmatpush2.bf16.xpose.msra.mxu0 0
        %775 = vmatprep.subr.bf16.mxu0 0
        %776 = vmatpush2.bf16.xpose.msra.mxu0 0
        %777 = vmatprep.subr.bf16.mxu0 0
        %778 = vmatpush2.bf16.xpose.msra.mxu0 0
        %779 = vmatprep.subr.bf16.mxu0 0
        %780 = vmatpush2.bf16.xpose.msra.mxu0 0
        %781 = vmatprep.subr.bf16.mxu0 0
        %782 = vmatpush2.bf16.xpose.msra.mxu0 0
        %783 = vmatprep.mubr.bf16.mxu0 0
        %784 = vmatmul.mubr.bf16.gmra.mxu0 %v746
        %v785 = vpop.f32.mrf.mxu0
        %v786 = vadd.f32 0.0, %v785
        %v787 = vpop.f32.mrf.mxu0
        %v788 = vpop.f32.mrf.mxu0
        %v789 = vpop.f32.mrf.mxu0
        %790 = vdwg.mxu0
        %v791 = vmul.f32 %v786, 0.35355338
        %v792 = vadd.f32 %v791, %v514
        %v793 = vsel %vm519, %v792, -inf
        %794 = vmax.xlane.f32.xlu0 %v793
        %v795 = vpop.xlane.xlu0 %794
        %v796 = vsub.f32 %v792, %v795
        %v797 = vmul.f32 %v796, 1.442695
        %v798 = vpow.pop %v797
        %v799 = vsel %vm519, %v798, 0.0
        %800 = vadd.xlane.f32.xlu0 %v799
        %v801 = vpop.xlane.xlu0 %800
        %v802 = vrcp.pop %v801
        %v803 = vmul.f32 %v798, %v802
        %v804 = vpack.c.bf16 %v803, %v803
        %805 = vrot.lane.b32.xlu0 %v515, 64
        %v806 = vpop.permute.xlu0 %805
        %v808 = vsel %vm519, %v804, 0
        %v811 = vsel %vm585, %v806, 0
        %813 = vmatprep.subr.bf16.mxu0 0
        %814 = vmatpush1.bf16.msra.mxu0 0
        %815 = vmatprep.subr.bf16.mxu0 0
        %816 = vmatpush1.bf16.msra.mxu0 0
        %817 = vmatprep.subr.bf16.mxu0 0
        %818 = vmatpush1.bf16.msra.mxu0 0
        %819 = vmatprep.subr.bf16.mxu0 0
        %820 = vmatpush1.bf16.msra.mxu0 0
        %821 = vmatprep.subr.bf16.mxu0 0
        %822 = vmatpush1.bf16.msra.mxu0 0
        %823 = vmatprep.subr.bf16.mxu0 0
        %824 = vmatpush1.bf16.msra.mxu0 0
        %825 = vmatprep.subr.bf16.mxu0 0
        %826 = vmatpush1.bf16.msra.mxu0 0
        %827 = vmatprep.subr.bf16.mxu0 0
        %828 = vmatpush1.bf16.msra.mxu0 %v811
        %829 = vmatprep.subr.bf16.mxu0 0
        %830 = vmatpush2.bf16.msra.mxu0 0
        %831 = vmatprep.subr.bf16.mxu0 0
        %832 = vmatpush2.bf16.msra.mxu0 0
        %833 = vmatprep.subr.bf16.mxu0 0
        %834 = vmatpush2.bf16.msra.mxu0 0
        %835 = vmatprep.subr.bf16.mxu0 0
        %836 = vmatpush2.bf16.msra.mxu0 0
        %837 = vmatprep.subr.bf16.mxu0 0
        %838 = vmatpush2.bf16.msra.mxu0 0
        %839 = vmatprep.subr.bf16.mxu0 0
        %840 = vmatpush2.bf16.msra.mxu0 0
        %841 = vmatprep.subr.bf16.mxu0 0
        %842 = vmatpush2.bf16.msra.mxu0 0
        %843 = vmatprep.subr.bf16.mxu0 0
        %844 = vmatpush2.bf16.msra.mxu0 0
        %845 = vmatprep.mubr.bf16.mxu0 0
        %846 = vmatmul.mubr.bf16.gmra.mxu0 %v808
        %v847 = vpop.f32.mrf.mxu0
        %v848 = vadd.f32 0.0, %v847
        %v849 = vpop.f32.mrf.mxu0
        %v850 = vpop.f32.mrf.mxu0
        %v851 = vpop.f32.mrf.mxu0
        %852 = vdwg.mxu0
        %853 = vrot.lane.b32.xlu0 %v515, 48
        %v854 = vpop.permute.xlu0 %853
        %855 = vrot.lane.b32.xlu0 %v515, 56
        %v856 = vpop.permute.xlu0 %855
        %v858 = vsel %vm519, %v854, 0
        %v861 = vsel %vm519, %v856, 0
        %863 = vmatprep.subr.bf16.mxu0 0
        %864 = vmatpush1.bf16.xpose.msra.mxu0 0
        %865 = vmatprep.subr.bf16.mxu0 0
        %866 = vmatpush1.bf16.xpose.msra.mxu0 0
        %867 = vmatprep.subr.bf16.mxu0 0
        %868 = vmatpush1.bf16.xpose.msra.mxu0 0
        %869 = vmatprep.subr.bf16.mxu0 0
        %870 = vmatpush1.bf16.xpose.msra.mxu0 0
        %871 = vmatprep.subr.bf16.mxu0 0
        %872 = vmatpush1.bf16.xpose.msra.mxu0 0
        %873 = vmatprep.subr.bf16.mxu0 0
        %874 = vmatpush1.bf16.xpose.msra.mxu0 0
        %875 = vmatprep.subr.bf16.mxu0 0
        %876 = vmatpush1.bf16.xpose.msra.mxu0 0
        %877 = vmatprep.subr.bf16.mxu0 0
        %878 = vmatpush1.bf16.xpose.msra.mxu0 %v861
        %879 = vmatprep.subr.bf16.mxu0 0
        %880 = vmatpush2.bf16.xpose.msra.mxu0 0
        %881 = vmatprep.subr.bf16.mxu0 0
        %882 = vmatpush2.bf16.xpose.msra.mxu0 0
        %883 = vmatprep.subr.bf16.mxu0 0
        %884 = vmatpush2.bf16.xpose.msra.mxu0 0
        %885 = vmatprep.subr.bf16.mxu0 0
        %886 = vmatpush2.bf16.xpose.msra.mxu0 0
        %887 = vmatprep.subr.bf16.mxu0 0
        %888 = vmatpush2.bf16.xpose.msra.mxu0 0
        %889 = vmatprep.subr.bf16.mxu0 0
        %890 = vmatpush2.bf16.xpose.msra.mxu0 0
        %891 = vmatprep.subr.bf16.mxu0 0
        %892 = vmatpush2.bf16.xpose.msra.mxu0 0
        %893 = vmatprep.subr.bf16.mxu0 0
        %894 = vmatpush2.bf16.xpose.msra.mxu0 0
        %895 = vmatprep.mubr.bf16.mxu0 0
        %896 = vmatmul.mubr.bf16.gmra.mxu0 %v858
        %v897 = vpop.f32.mrf.mxu0
        %v898 = vadd.f32 0.0, %v897
        %v899 = vpop.f32.mrf.mxu0
        %v900 = vpop.f32.mrf.mxu0
        %v901 = vpop.f32.mrf.mxu0
        %902 = vdwg.mxu0
        %v903 = vmul.f32 %v898, 0.35355338
        %v904 = vadd.f32 %v903, %v514
        %v905 = vsel %vm519, %v904, -inf
        %906 = vmax.xlane.f32.xlu0 %v905
        %v907 = vpop.xlane.xlu0 %906
        %v908 = vsub.f32 %v904, %v907
        %v909 = vmul.f32 %v908, 1.442695
        %v910 = vpow.pop %v909
        %v911 = vsel %vm519, %v910, 0.0
        %912 = vadd.xlane.f32.xlu0 %v911
        %v913 = vpop.xlane.xlu0 %912
        %v914 = vrcp.pop %v913
        %v915 = vmul.f32 %v910, %v914
        %v916 = vpack.c.bf16 %v915, %v915
        %917 = vrot.lane.b32.xlu0 %v515, 40
        %v918 = vpop.permute.xlu0 %917
        %v920 = vsel %vm519, %v916, 0
        %v923 = vsel %vm585, %v918, 0
        %925 = vmatprep.subr.bf16.mxu0 0
        %926 = vmatpush1.bf16.msra.mxu0 0
        %927 = vmatprep.subr.bf16.mxu0 0
        %928 = vmatpush1.bf16.msra.mxu0 0
        %929 = vmatprep.subr.bf16.mxu0 0
        %930 = vmatpush1.bf16.msra.mxu0 0
        %931 = vmatprep.subr.bf16.mxu0 0
        %932 = vmatpush1.bf16.msra.mxu0 0
        %933 = vmatprep.subr.bf16.mxu0 0
        %934 = vmatpush1.bf16.msra.mxu0 0
        %935 = vmatprep.subr.bf16.mxu0 0
        %936 = vmatpush1.bf16.msra.mxu0 0
        %937 = vmatprep.subr.bf16.mxu0 0
        %938 = vmatpush1.bf16.msra.mxu0 0
        %939 = vmatprep.subr.bf16.mxu0 0
        %940 = vmatpush1.bf16.msra.mxu0 %v923
        %941 = vmatprep.subr.bf16.mxu0 0
        %942 = vmatpush2.bf16.msra.mxu0 0
        %943 = vmatprep.subr.bf16.mxu0 0
        %944 = vmatpush2.bf16.msra.mxu0 0
        %945 = vmatprep.subr.bf16.mxu0 0
        %946 = vmatpush2.bf16.msra.mxu0 0
        %947 = vmatprep.subr.bf16.mxu0 0
        %948 = vmatpush2.bf16.msra.mxu0 0
        %949 = vmatprep.subr.bf16.mxu0 0
        %950 = vmatpush2.bf16.msra.mxu0 0
        %951 = vmatprep.subr.bf16.mxu0 0
        %952 = vmatpush2.bf16.msra.mxu0 0
        %953 = vmatprep.subr.bf16.mxu0 0
        %954 = vmatpush2.bf16.msra.mxu0 0
        %955 = vmatprep.subr.bf16.mxu0 0
        %956 = vmatpush2.bf16.msra.mxu0 0
        %957 = vmatprep.mubr.bf16.mxu0 0
        %958 = vmatmul.mubr.bf16.gmra.mxu0 %v920
        %v959 = vpop.f32.mrf.mxu0
        %v960 = vadd.f32 0.0, %v959
        %v961 = vpop.f32.mrf.mxu0
        %v962 = vpop.f32.mrf.mxu0
        %v963 = vpop.f32.mrf.mxu0
        %964 = vdwg.mxu0
        %966 = vrot.lane.b32.xlu0 %v736, 8
        %v967 = vpop.permute.xlu0 %966
        %970 = vrot.lane.b32.xlu0 %v848, 16
        %v971 = vpop.permute.xlu0 %970
        %974 = vrot.lane.b32.xlu0 %v960, 24
        %v975 = vpop.permute.xlu0 %974
        %v977 = vsel %vm519, %v624, %v967
        %vm978 = vcmask 130048
        %v979 = vsel %vm978, %v977, %v971
        %vm980 = vcmask 195584
        %v981 = vsel %vm980, %v979, %v975
        %v982 = vld [vmem:[#allocation3] sm:$0xff]
        %v983 = vpack.c.bf16 %v981, %v981
        %v984 = vld [vmem:[#allocation10] sm:$0xf]
        %v985 = vld [vmem:[#allocation10 + $0x4] sm:$0xf]
        %v986 = vld [vmem:[#allocation10 + $0x8] sm:$0xf]
        %v987 = vld [vmem:[#allocation10 + $0xc] sm:$0xf]
        %v992 = vunpack.c.l.b16 %v984
        %v993 = vunpack.c.l.b16 %v985
        %v994 = vunpack.c.l.b16 %v986
        %v995 = vunpack.c.l.b16 %v987
        %v996 = vpack.c.b16 %v993, %v992
        %v997 = vpack.c.b16 %v995, %v994
        %v1001 = vsel %vm470, %v983, 0
        %1003 = vmatprep.subr.bf16.mxu0 0
        %1004 = vmatpush1.bf16.msra.mxu0 0
        %1005 = vmatprep.subr.bf16.mxu0 0
        %1006 = vmatpush1.bf16.msra.mxu0 0
        %1007 = vmatprep.subr.bf16.mxu0 0
        %1008 = vmatpush1.bf16.msra.mxu0 0
        %1009 = vmatprep.subr.bf16.mxu0 0
        %1010 = vmatpush1.bf16.msra.mxu0 0
        %1011 = vmatprep.subr.bf16.mxu0 0
        %1012 = vmatpush1.bf16.msra.mxu0 0
        %1013 = vmatprep.subr.bf16.mxu0 0
        %1014 = vmatpush1.bf16.msra.mxu0 0
        %1015 = vmatprep.subr.bf16.mxu0 0
        %1016 = vmatpush1.bf16.msra.mxu0 %v997
        %1017 = vmatprep.subr.bf16.mxu0 0
        %1018 = vmatpush1.bf16.msra.mxu0 %v996
        %1019 = vmatprep.subr.bf16.mxu0 0
        %1020 = vmatpush2.bf16.msra.mxu0 0
        %1021 = vmatprep.subr.bf16.mxu0 0
        %1022 = vmatpush2.bf16.msra.mxu0 0
        %1023 = vmatprep.subr.bf16.mxu0 0
        %1024 = vmatpush2.bf16.msra.mxu0 0
        %1025 = vmatprep.subr.bf16.mxu0 0
        %1026 = vmatpush2.bf16.msra.mxu0 0
        %1027 = vmatprep.subr.bf16.mxu0 0
        %1028 = vmatpush2.bf16.msra.mxu0 0
        %1029 = vmatprep.subr.bf16.mxu0 0
        %1030 = vmatpush2.bf16.msra.mxu0 0
        %1031 = vmatprep.subr.bf16.mxu0 0
        %1032 = vmatpush2.bf16.msra.mxu0 0
        %1033 = vmatprep.subr.bf16.mxu0 0
        %1034 = vmatpush2.bf16.msra.mxu0 0
        %1035 = vmatprep.mubr.bf16.mxu0 0
        %1036 = vmatmul.mubr.bf16.gmra.mxu0 %v1001
        %v1037 = vpop.f32.mrf.mxu0
        %v1038 = vadd.f32 0.0, %v1037
        %v1039 = vpop.f32.mrf.mxu0
        %v1040 = vpop.f32.mrf.mxu0
        %v1041 = vpop.f32.mrf.mxu0
        %1042 = vdwg.mxu0
        %v1043 = vadd.f32 %v982, %v1038
        %1044 = vst.msk [vmem:[#allocation3] sm:$0xff] %vm470, %v1043
        // Predicated region
        $region73: #{tpu_custom_call.1} parent=51 // pred_check
          %p1045 = pneg %p406
        $region74: #{tpu_custom_call.1} parent=51 // pred_check_branch
          %1047 = sbr.rel (%p1045) target = $region76
        $region75: #{tpu_custom_call.1} parent=51 // pred_region
          %v1048 = vld [vmem:[%s354] sm:$0xff]
          %v1049 = vld [vmem:[#allocation3] sm:$0xff]
          %v1050 = vadd.f32 %v1048, %v1049
          %v1051 = vld [vmem:[%s7] sm:$0x1]
          %v1053 = vlaneseq
          %v1054 = vshrl.u32 %v1053, 7
          %v1055 = vsub.s32 0, %v1054
          %v1056 = vrot.slane %v1051, %v1055
          %v1058 = vadd.f32 %v1050, %v1056
          %1059 = vst.msk [vmem:[%s401] sm:$0xff] %vm470, %v1058
        $region76: #{tpu_custom_call.1} parent=51 // pred_fallthru
          _
        %s1060 = sand.u32 %s235, 1
        %s1061 = scalar_lea.sflag [#allocation6], %s1060
        %s1062 = sand.u32 %s235, 1
        %s1063 = smul.addr %s1062, 8
        %s1064 = scalar_lea.vmem [#allocation12], %s1063
        // Predicated region
        $region77: #{tpu_custom_call.1} parent=51 // pred_check
          %p1065 = pneg %p245
        $region78: #{tpu_custom_call.1} parent=51 // pred_check_branch
          %1067 = sbr.rel (%p1065) target = $region80
        $region79: #{tpu_custom_call.1} parent=51 // pred_region
          %s1069 = ssub.s32 128, 128
          %1070 = vsyncadd %s1061, %s1069
          %s1071 = smul.addr %s31, 128
          %s1072 = scalar_lea.hbm %s8, %s1071
          %s1074 = sshll.u32 %s1064, 4
          %s1075 = int_to_ptr.vmem [resolvable:$true] %s1074
          %1077 = dma.vmem_to_hbm [thread:$0]  %s1075, 128, %s1072, %s1061
        $region80: #{tpu_custom_call.1} parent=51 // pred_fallthru
          _
      $region52: #{tpu_custom_call.1} parent=5 // pred_fallthru
        _
      %p1078 = scmp.le.s32.totalorder 2, %s22
      // Predicated region
      $region81: #{tpu_custom_call.1} parent=5 // pred_check
        %p1079 = pneg %p1078
      $region82: #{tpu_custom_call.1} parent=5 // pred_check_branch
        %1081 = sbr.rel (%p1079) target = $region84
      $region83: #{tpu_custom_call.1} parent=5 // pred_region
        %s1082 = ssub.s32 %s22, 2
        // Predicated region
        $region85: #{tpu_custom_call.1} parent=83 // pred_check
          %p1083 = pneg %p251
        $region86: #{tpu_custom_call.1} parent=83 // pred_check_branch
          %1085 = sbr.rel (%p1083) target = $region88
        $region87: #{tpu_custom_call.1} parent=83 // pred_region
          %s1086 = sand.u32 %s236, 1
          %s1087 = scalar_lea.sflag [#allocation6], %s1086
          %s1088 = sand.u32 %s236, 1
          %s1089 = smul.addr %s1088, 8
          %s1090 = scalar_lea.vmem [#allocation12], %s1089
          %1091 = dma.done %s1087, 128
        $region88: #{tpu_custom_call.1} parent=83 // pred_fallthru
          _
      $region84: #{tpu_custom_call.1} parent=5 // pred_fallthru
        _
    $region6: #{tpu_custom_call.1} parent=1 // loop_footer
      %s26 = sadd.s32 1, %s22
    $region7: #{tpu_custom_call.1} parent=1 // loop_footer_branch
      %21 = sbr.rel target = $region3
    $region8: #{tpu_custom_call.1} parent=1 // loop_exit
      _
    %1092 = vsyncpa [#allocation5], 1
    %s1093 = scalar_lea.sflag [#allocation5], 1
    %1094 = vsyncpa %s1093, 1
    %1095 = vsyncpa [#allocation8], 1
    %1096 = vsyncpa [#allocation11], 1
    %1097 = vsyncpa [#allocation6], 1
    %s1098 = scalar_lea.sflag [#allocation6], 1
    %1099 = vsyncpa %s1098, 1

</llo_original>
